<compile_context>
chip_gen: v5e
topology: v5e:2x2
jax: 0.10.0
libtpu: 0.0.40
codegen_flags: <defaults>
</compile_context>

<pallas_src>
import jax
import jax.numpy as jnp
from jax.experimental import pallas as pl
from jax.experimental.pallas import tpu as pltpu


def _round_up(n: int, m: int) -> int:
    return ((n + m - 1) // m) * m


def _make_fused_kernel(C, F, DS, HW, offsets):
    """Build the fused quanv-surrogate + linear-classifier kernel body."""

    def kernel(x_ref, w_q_ref, b_q_ref, w_pad_ref, b_c_ref, out_ref):
        # x_ref:     (1, C, PADW)   tail-padded flattened image      (VMEM)
        # w_q_ref:   (DS, F)        quanv surrogate weights          (SMEM)
        # b_q_ref:   (1, F)         quanv surrogate bias             (SMEM)
        # w_pad_ref: (C*F, HW, NC)  zero-padded classifier weights   (VMEM)
        # b_c_ref:   (1, NC)        classifier bias                  (VMEM)
        # out_ref:   (1, 1, NC)
        xp = x_ref[0]                                    # (C, PADW)
        # One lane-dense (C, HW) shifted view per window offset (static slices).
        shifted = [xp[:, off:off + HW] for off in offsets]

        acc = b_c_ref[...]                               # (1, NC) f32
        for f in range(F):
            # Quanv surrogate, filter f, all channels / positions at once:
            # DS unrolled VPU FMAs + one EUP sigmoid, 256 lanes dense.
            z = shifted[0] * w_q_ref[0, f]
            for ds in range(1, DS):
                z = z + shifted[ds] * w_q_ref[ds, f]
            q_f = jax.nn.sigmoid(z + b_q_ref[0, f])      # (C, HW)
            # Linear layer: weight rows were pre-scattered (zeros at the
            # invalid padded positions), so accumulate directly -- no
            # transpose / reshape / masking of q_f, and q_f never hits HBM.
            for c in range(C):
                acc = acc + jnp.dot(q_f[c:c + 1, :],
                                    w_pad_ref[c * F + f],
                                    preferred_element_type=jnp.float32)
        out_ref[0] = acc

    return kernel


def quanv_nn_forward(x, w_q, b_q, w_c, b_c, kernel_size, num_filters):
    """x: (B, C, H, W) -> logits (B, num_classes)."""
    B, C, H, W = x.shape
    kh, kw = kernel_size
    F = num_filters
    nh, nw = H - kh + 1, W - kw + 1
    DS = kh * kw
    HW = H * W
    NC = w_c.shape[1]
    assert w_c.shape[0] == C * F * nh * nw

    # Lane-dense flattened image, tail-padded so window shifts are in-kernel
    # static slices (no im2col / kh*kw HBM expansion).
    max_off = (kh - 1) * W + (kw - 1)
    PADW = _round_up(HW + max_off, 128)
    x_pad = jnp.pad(x.reshape(B, C, HW).astype(jnp.float32),
                    ((0, 0), (0, 0), (0, PADW - HW)))

    # Pre-scatter the classifier weight rows onto the full (H, W) grid with
    # zero rows at invalid window positions.  Row ordering (c, f, i, j)
    # matches the reference module's vstack-over-channels + flatten.
    w_r = w_c.astype(jnp.float32).reshape(C * F, nh, nw, NC)
    w_pad = jnp.zeros((C * F, H, W, NC), jnp.float32)
    w_pad = w_pad.at[:, :nh, :nw, :].set(w_r).reshape(C * F, HW, NC)

    offsets = tuple(di * W + dj for di in range(kh) for dj in range(kw))
    kernel = _make_fused_kernel(C, F, DS, HW, offsets)

    out = pl.pallas_call(
        kernel,
        out_shape=jax.ShapeDtypeStruct((B, 1, NC), jnp.float32),
        grid=(B,),
        in_specs=[
            pl.BlockSpec((1, C, PADW), lambda b: (b, 0, 0)),      # image slab
            pl.BlockSpec(memory_space=pltpu.MemorySpace.SMEM),    # w_q scalars
            pl.BlockSpec(memory_space=pltpu.MemorySpace.SMEM),    # b_q scalars
            pl.BlockSpec((C * F, HW, NC), lambda b: (0, 0, 0)),   # resident
            pl.BlockSpec((1, NC), lambda b: (0, 0)),
        ],
        out_specs=pl.BlockSpec((1, 1, NC), lambda b: (b, 0, 0)),
        compiler_params=pltpu.CompilerParams(
            dimension_semantics=("parallel",),   # shards over 2 TCs on v7x
        ),
    )(x_pad, w_q.astype(jnp.float32), b_q.astype(jnp.float32), w_pad,
      b_c.astype(jnp.float32))
    return out.reshape(B, NC)


def reference_forward(x, w_q, b_q, w_c, b_c, kernel_size, num_filters):
    """Plain-JAX reference of the same forward pass (for verification)."""
    B, C, H, W = x.shape
    kh, kw = kernel_size
    nh, nw = H - kh + 1, W - kw + 1
    slabs = [x[:, :, i:i + nh, j:j + nw] for i in range(kh) for j in range(kw)]
    patches = jnp.stack(slabs, axis=-1)                      # (B, C, nh, nw, DS)
    q = jax.nn.sigmoid(jnp.einsum("bcijd,df->bcijf", patches, w_q) + b_q[0])
    q = jnp.transpose(q, (0, 1, 4, 2, 3)).reshape(B, -1)     # (B, C*F*nh*nw)
    return q @ w_c + b_c


if __name__ == "__main__":
    # Small, deterministic configuration consistent with the module's forward.
    B, C, H, W = 2, 4, 16, 16
    kernel_size = (2, 2)
    num_filters = 3
    num_classes = 10

    kh, kw = kernel_size
    nh, nw = H - kh + 1, W - kw + 1
    data_size = kh * kw
    D = C * num_filters * nh * nw

    key = jax.random.PRNGKey(0)
    k_x, k_wq, k_bq, k_wc, k_bc = jax.random.split(key, 5)

    x = jax.random.uniform(k_x, (B, C, H, W), dtype=jnp.float32)

    # quanv surrogate parameters
    w_q = jax.random.normal(k_wq, (data_size, num_filters), dtype=jnp.float32) * 0.5
    b_q = jax.random.normal(k_bq, (1, num_filters), dtype=jnp.float32) * 0.1

    # classical linear classifier parameters
    w_c = jax.random.normal(k_wc, (D, num_classes), dtype=jnp.float32) * 0.02
    b_c = jax.random.normal(k_bc, (1, num_classes), dtype=jnp.float32) * 0.01

    out = quanv_nn_forward(x, w_q, b_q, w_c, b_c, kernel_size, num_filters)
    out = jax.block_until_ready(out)

    assert out.shape == (B, num_classes), out.shape
    assert out.dtype == jnp.float32

    ref = reference_forward(x, w_q, b_q, w_c, b_c, kernel_size, num_filters)
    assert jnp.allclose(out, ref, rtol=2e-3, atol=2e-4), (
        float(jnp.max(jnp.abs(out - ref))))

    print("KERNEL_OK")
</pallas_src>

<mosaic_0001>
module attributes {stable_mosaic.version = 11 : i64} {
  func.func @kernel(%arg0: i32, %arg1: memref<1x4x384xf32, #tpu.memory_space<vmem>>, %arg2: memref<4x3xf32, #tpu.memory_space<smem>>, %arg3: memref<1x3xf32, #tpu.memory_space<smem>>, %arg4: memref<12x256x10xf32, #tpu.memory_space<vmem>>, %arg5: memref<1x10xf32, #tpu.memory_space<vmem>>, %arg6: memref<1x1x10xf32, #tpu.memory_space<vmem>>) attributes {dimension_semantics = [#tpu.dimension_semantics<parallel>], iteration_bounds = array<i64: 2>, scalar_prefetch = 0 : i64, scratch_operands = 0 : i64, tpu.core_type = #tpu.core_type<tc>, window_params = [{transform_indices = @transform_0, window_bounds = array<i64: 1, 4, 384>}, {transform_indices = @transform_1, window_bounds = array<i64: 4, 3>}, {transform_indices = @transform_2, window_bounds = array<i64: 1, 3>}, {pipeline_mode = #tpu.pipeline_mode<synchronous>, transform_indices = @transform_3, window_bounds = array<i64: 12, 256, 10>}, {pipeline_mode = #tpu.pipeline_mode<synchronous>, transform_indices = @transform_4, window_bounds = array<i64: 1, 10>}, {transform_indices = @transform_5, window_bounds = array<i64: 1, 1, 10>}]} {
    %c0 = arith.constant 0 : index
    %c0_0 = arith.constant 0 : index
    %c0_1 = arith.constant 0 : index
    %0 = vector.load %arg1[%c0, %c0_0, %c0_1] : memref<1x4x384xf32, #tpu.memory_space<vmem>>, vector<1x4x384xf32>
    %1 = vector.shape_cast %0 : vector<1x4x384xf32> to vector<4x384xf32>
    %2 = vector.extract_strided_slice %1 {offsets = [0, 0], sizes = [4, 256], strides = [1, 1]} : vector<4x384xf32> to vector<4x256xf32>
    %3 = vector.extract_strided_slice %1 {offsets = [0, 1], sizes = [4, 256], strides = [1, 1]} : vector<4x384xf32> to vector<4x256xf32>
    %4 = vector.extract_strided_slice %1 {offsets = [0, 16], sizes = [4, 256], strides = [1, 1]} : vector<4x384xf32> to vector<4x256xf32>
    %5 = vector.extract_strided_slice %1 {offsets = [0, 17], sizes = [4, 256], strides = [1, 1]} : vector<4x384xf32> to vector<4x256xf32>
    %c0_2 = arith.constant 0 : index
    %c0_3 = arith.constant 0 : index
    %6 = vector.load %arg5[%c0_2, %c0_3] : memref<1x10xf32, #tpu.memory_space<vmem>>, vector<1x10xf32>
    %c0_4 = arith.constant 0 : index
    %c0_5 = arith.constant 0 : index
    %7 = memref.load %arg2[%c0_4, %c0_5] : memref<4x3xf32, #tpu.memory_space<smem>>
    %8 = vector.broadcast %7 : f32 to vector<4x256xf32>
    %9 = arith.mulf %2, %8 : vector<4x256xf32>
    %c1 = arith.constant 1 : index
    %c0_6 = arith.constant 0 : index
    %10 = memref.load %arg2[%c1, %c0_6] : memref<4x3xf32, #tpu.memory_space<smem>>
    %11 = vector.broadcast %10 : f32 to vector<4x256xf32>
    %12 = arith.mulf %3, %11 : vector<4x256xf32>
    %13 = arith.addf %9, %12 : vector<4x256xf32>
    %c2 = arith.constant 2 : index
    %c0_7 = arith.constant 0 : index
    %14 = memref.load %arg2[%c2, %c0_7] : memref<4x3xf32, #tpu.memory_space<smem>>
    %15 = vector.broadcast %14 : f32 to vector<4x256xf32>
    %16 = arith.mulf %4, %15 : vector<4x256xf32>
    %17 = arith.addf %13, %16 : vector<4x256xf32>
    %c3 = arith.constant 3 : index
    %c0_8 = arith.constant 0 : index
    %18 = memref.load %arg2[%c3, %c0_8] : memref<4x3xf32, #tpu.memory_space<smem>>
    %19 = vector.broadcast %18 : f32 to vector<4x256xf32>
    %20 = arith.mulf %5, %19 : vector<4x256xf32>
    %21 = arith.addf %17, %20 : vector<4x256xf32>
    %c0_9 = arith.constant 0 : index
    %c0_10 = arith.constant 0 : index
    %22 = memref.load %arg3[%c0_9, %c0_10] : memref<1x3xf32, #tpu.memory_space<smem>>
    %23 = vector.broadcast %22 : f32 to vector<4x256xf32>
    %24 = arith.addf %21, %23 : vector<4x256xf32>
    %25 = arith.negf %24 : vector<4x256xf32>
    %26 = math.exp %25 : vector<4x256xf32>
    %cst = arith.constant 1.000000e+00 : f32
    %27 = vector.broadcast %cst : f32 to vector<4x256xf32>
    %28 = arith.addf %27, %26 : vector<4x256xf32>
    %29 = arith.divf %27, %28 : vector<4x256xf32>
    %30 = vector.extract_strided_slice %29 {offsets = [0, 0], sizes = [1, 256], strides = [1, 1]} : vector<4x256xf32> to vector<1x256xf32>
    %c0_11 = arith.constant 0 : index
    %c0_12 = arith.constant 0 : index
    %c0_13 = arith.constant 0 : index
    %31 = vector.load %arg4[%c0_11, %c0_12, %c0_13] : memref<12x256x10xf32, #tpu.memory_space<vmem>>, vector<1x256x10xf32>
    %32 = vector.shape_cast %31 : vector<1x256x10xf32> to vector<256x10xf32>
    %cst_14 = arith.constant dense<0.000000e+00> : vector<1x10xf32>
    %33 = tpu.matmul %30, %32, %cst_14 {dimension_numbers = #tpu.dot_dimension_numbers<[1], [0], [0], [1], [0, 0, 1, 1], [], []>} : vector<1x256xf32>, vector<256x10xf32>, vector<1x10xf32> -> vector<1x10xf32>
    %34 = arith.addf %6, %33 : vector<1x10xf32>
    %35 = vector.extract_strided_slice %29 {offsets = [1, 0], sizes = [1, 256], strides = [1, 1]} : vector<4x256xf32> to vector<1x256xf32>
    %c3_15 = arith.constant 3 : index
    %c0_16 = arith.constant 0 : index
    %c0_17 = arith.constant 0 : index
    %36 = vector.load %arg4[%c3_15, %c0_16, %c0_17] : memref<12x256x10xf32, #tpu.memory_space<vmem>>, vector<1x256x10xf32>
    %37 = vector.shape_cast %36 : vector<1x256x10xf32> to vector<256x10xf32>
    %cst_18 = arith.constant dense<0.000000e+00> : vector<1x10xf32>
    %38 = tpu.matmul %35, %37, %cst_18 {dimension_numbers = #tpu.dot_dimension_numbers<[1], [0], [0], [1], [0, 0, 1, 1], [], []>} : vector<1x256xf32>, vector<256x10xf32>, vector<1x10xf32> -> vector<1x10xf32>
    %39 = arith.addf %34, %38 : vector<1x10xf32>
    %40 = vector.extract_strided_slice %29 {offsets = [2, 0], sizes = [1, 256], strides = [1, 1]} : vector<4x256xf32> to vector<1x256xf32>
    %c6 = arith.constant 6 : index
    %c0_19 = arith.constant 0 : index
    %c0_20 = arith.constant 0 : index
    %41 = vector.load %arg4[%c6, %c0_19, %c0_20] : memref<12x256x10xf32, #tpu.memory_space<vmem>>, vector<1x256x10xf32>
    %42 = vector.shape_cast %41 : vector<1x256x10xf32> to vector<256x10xf32>
    %cst_21 = arith.constant dense<0.000000e+00> : vector<1x10xf32>
    %43 = tpu.matmul %40, %42, %cst_21 {dimension_numbers = #tpu.dot_dimension_numbers<[1], [0], [0], [1], [0, 0, 1, 1], [], []>} : vector<1x256xf32>, vector<256x10xf32>, vector<1x10xf32> -> vector<1x10xf32>
    %44 = arith.addf %39, %43 : vector<1x10xf32>
    %45 = vector.extract_strided_slice %29 {offsets = [3, 0], sizes = [1, 256], strides = [1, 1]} : vector<4x256xf32> to vector<1x256xf32>
    %c9 = arith.constant 9 : index
    %c0_22 = arith.constant 0 : index
    %c0_23 = arith.constant 0 : index
    %46 = vector.load %arg4[%c9, %c0_22, %c0_23] : memref<12x256x10xf32, #tpu.memory_space<vmem>>, vector<1x256x10xf32>
    %47 = vector.shape_cast %46 : vector<1x256x10xf32> to vector<256x10xf32>
    %cst_24 = arith.constant dense<0.000000e+00> : vector<1x10xf32>
    %48 = tpu.matmul %45, %47, %cst_24 {dimension_numbers = #tpu.dot_dimension_numbers<[1], [0], [0], [1], [0, 0, 1, 1], [], []>} : vector<1x256xf32>, vector<256x10xf32>, vector<1x10xf32> -> vector<1x10xf32>
    %49 = arith.addf %44, %48 : vector<1x10xf32>
    %c0_25 = arith.constant 0 : index
    %c1_26 = arith.constant 1 : index
    %50 = memref.load %arg2[%c0_25, %c1_26] : memref<4x3xf32, #tpu.memory_space<smem>>
    %51 = vector.broadcast %50 : f32 to vector<4x256xf32>
    %52 = arith.mulf %2, %51 : vector<4x256xf32>
    %c1_27 = arith.constant 1 : index
    %c1_28 = arith.constant 1 : index
    %53 = memref.load %arg2[%c1_27, %c1_28] : memref<4x3xf32, #tpu.memory_space<smem>>
    %54 = vector.broadcast %53 : f32 to vector<4x256xf32>
    %55 = arith.mulf %3, %54 : vector<4x256xf32>
    %56 = arith.addf %52, %55 : vector<4x256xf32>
    %c2_29 = arith.constant 2 : index
    %c1_30 = arith.constant 1 : index
    %57 = memref.load %arg2[%c2_29, %c1_30] : memref<4x3xf32, #tpu.memory_space<smem>>
    %58 = vector.broadcast %57 : f32 to vector<4x256xf32>
    %59 = arith.mulf %4, %58 : vector<4x256xf32>
    %60 = arith.addf %56, %59 : vector<4x256xf32>
    %c3_31 = arith.constant 3 : index
    %c1_32 = arith.constant 1 : index
    %61 = memref.load %arg2[%c3_31, %c1_32] : memref<4x3xf32, #tpu.memory_space<smem>>
    %62 = vector.broadcast %61 : f32 to vector<4x256xf32>
    %63 = arith.mulf %5, %62 : vector<4x256xf32>
    %64 = arith.addf %60, %63 : vector<4x256xf32>
    %c0_33 = arith.constant 0 : index
    %c1_34 = arith.constant 1 : index
    %65 = memref.load %arg3[%c0_33, %c1_34] : memref<1x3xf32, #tpu.memory_space<smem>>
    %66 = vector.broadcast %65 : f32 to vector<4x256xf32>
    %67 = arith.addf %64, %66 : vector<4x256xf32>
    %68 = arith.negf %67 : vector<4x256xf32>
    %69 = math.exp %68 : vector<4x256xf32>
    %cst_35 = arith.constant 1.000000e+00 : f32
    %70 = vector.broadcast %cst_35 : f32 to vector<4x256xf32>
    %71 = arith.addf %70, %69 : vector<4x256xf32>
    %72 = arith.divf %70, %71 : vector<4x256xf32>
    %73 = vector.extract_strided_slice %72 {offsets = [0, 0], sizes = [1, 256], strides = [1, 1]} : vector<4x256xf32> to vector<1x256xf32>
    %c1_36 = arith.constant 1 : index
    %c0_37 = arith.constant 0 : index
    %c0_38 = arith.constant 0 : index
    %74 = vector.load %arg4[%c1_36, %c0_37, %c0_38] : memref<12x256x10xf32, #tpu.memory_space<vmem>>, vector<1x256x10xf32>
    %75 = vector.shape_cast %74 : vector<1x256x10xf32> to vector<256x10xf32>
    %cst_39 = arith.constant dense<0.000000e+00> : vector<1x10xf32>
    %76 = tpu.matmul %73, %75, %cst_39 {dimension_numbers = #tpu.dot_dimension_numbers<[1], [0], [0], [1], [0, 0, 1, 1], [], []>} : vector<1x256xf32>, vector<256x10xf32>, vector<1x10xf32> -> vector<1x10xf32>
    %77 = arith.addf %49, %76 : vector<1x10xf32>
    %78 = vector.extract_strided_slice %72 {offsets = [1, 0], sizes = [1, 256], strides = [1, 1]} : vector<4x256xf32> to vector<1x256xf32>
    %c4 = arith.constant 4 : index
    %c0_40 = arith.constant 0 : index
    %c0_41 = arith.constant 0 : index
    %79 = vector.load %arg4[%c4, %c0_40, %c0_41] : memref<12x256x10xf32, #tpu.memory_space<vmem>>, vector<1x256x10xf32>
    %80 = vector.shape_cast %79 : vector<1x256x10xf32> to vector<256x10xf32>
    %cst_42 = arith.constant dense<0.000000e+00> : vector<1x10xf32>
    %81 = tpu.matmul %78, %80, %cst_42 {dimension_numbers = #tpu.dot_dimension_numbers<[1], [0], [0], [1], [0, 0, 1, 1], [], []>} : vector<1x256xf32>, vector<256x10xf32>, vector<1x10xf32> -> vector<1x10xf32>
    %82 = arith.addf %77, %81 : vector<1x10xf32>
    %83 = vector.extract_strided_slice %72 {offsets = [2, 0], sizes = [1, 256], strides = [1, 1]} : vector<4x256xf32> to vector<1x256xf32>
    %c7 = arith.constant 7 : index
    %c0_43 = arith.constant 0 : index
    %c0_44 = arith.constant 0 : index
    %84 = vector.load %arg4[%c7, %c0_43, %c0_44] : memref<12x256x10xf32, #tpu.memory_space<vmem>>, vector<1x256x10xf32>
    %85 = vector.shape_cast %84 : vector<1x256x10xf32> to vector<256x10xf32>
    %cst_45 = arith.constant dense<0.000000e+00> : vector<1x10xf32>
    %86 = tpu.matmul %83, %85, %cst_45 {dimension_numbers = #tpu.dot_dimension_numbers<[1], [0], [0], [1], [0, 0, 1, 1], [], []>} : vector<1x256xf32>, vector<256x10xf32>, vector<1x10xf32> -> vector<1x10xf32>
    %87 = arith.addf %82, %86 : vector<1x10xf32>
    %88 = vector.extract_strided_slice %72 {offsets = [3, 0], sizes = [1, 256], strides = [1, 1]} : vector<4x256xf32> to vector<1x256xf32>
    %c10 = arith.constant 10 : index
    %c0_46 = arith.constant 0 : index
    %c0_47 = arith.constant 0 : index
    %89 = vector.load %arg4[%c10, %c0_46, %c0_47] : memref<12x256x10xf32, #tpu.memory_space<vmem>>, vector<1x256x10xf32>
    %90 = vector.shape_cast %89 : vector<1x256x10xf32> to vector<256x10xf32>
    %cst_48 = arith.constant dense<0.000000e+00> : vector<1x10xf32>
    %91 = tpu.matmul %88, %90, %cst_48 {dimension_numbers = #tpu.dot_dimension_numbers<[1], [0], [0], [1], [0, 0, 1, 1], [], []>} : vector<1x256xf32>, vector<256x10xf32>, vector<1x10xf32> -> vector<1x10xf32>
    %92 = arith.addf %87, %91 : vector<1x10xf32>
    %c0_49 = arith.constant 0 : index
    %c2_50 = arith.constant 2 : index
    %93 = memref.load %arg2[%c0_49, %c2_50] : memref<4x3xf32, #tpu.memory_space<smem>>
    %94 = vector.broadcast %93 : f32 to vector<4x256xf32>
    %95 = arith.mulf %2, %94 : vector<4x256xf32>
    %c1_51 = arith.constant 1 : index
    %c2_52 = arith.constant 2 : index
    %96 = memref.load %arg2[%c1_51, %c2_52] : memref<4x3xf32, #tpu.memory_space<smem>>
    %97 = vector.broadcast %96 : f32 to vector<4x256xf32>
    %98 = arith.mulf %3, %97 : vector<4x256xf32>
    %99 = arith.addf %95, %98 : vector<4x256xf32>
    %c2_53 = arith.constant 2 : index
    %c2_54 = arith.constant 2 : index
    %100 = memref.load %arg2[%c2_53, %c2_54] : memref<4x3xf32, #tpu.memory_space<smem>>
    %101 = vector.broadcast %100 : f32 to vector<4x256xf32>
    %102 = arith.mulf %4, %101 : vector<4x256xf32>
    %103 = arith.addf %99, %102 : vector<4x256xf32>
    %c3_55 = arith.constant 3 : index
    %c2_56 = arith.constant 2 : index
    %104 = memref.load %arg2[%c3_55, %c2_56] : memref<4x3xf32, #tpu.memory_space<smem>>
    %105 = vector.broadcast %104 : f32 to vector<4x256xf32>
    %106 = arith.mulf %5, %105 : vector<4x256xf32>
    %107 = arith.addf %103, %106 : vector<4x256xf32>
    %c0_57 = arith.constant 0 : index
    %c2_58 = arith.constant 2 : index
    %108 = memref.load %arg3[%c0_57, %c2_58] : memref<1x3xf32, #tpu.memory_space<smem>>
    %109 = vector.broadcast %108 : f32 to vector<4x256xf32>
    %110 = arith.addf %107, %109 : vector<4x256xf32>
    %111 = arith.negf %110 : vector<4x256xf32>
    %112 = math.exp %111 : vector<4x256xf32>
    %cst_59 = arith.constant 1.000000e+00 : f32
    %113 = vector.broadcast %cst_59 : f32 to vector<4x256xf32>
    %114 = arith.addf %113, %112 : vector<4x256xf32>
    %115 = arith.divf %113, %114 : vector<4x256xf32>
    %116 = vector.extract_strided_slice %115 {offsets = [0, 0], sizes = [1, 256], strides = [1, 1]} : vector<4x256xf32> to vector<1x256xf32>
    %c2_60 = arith.constant 2 : index
    %c0_61 = arith.constant 0 : index
    %c0_62 = arith.constant 0 : index
    %117 = vector.load %arg4[%c2_60, %c0_61, %c0_62] : memref<12x256x10xf32, #tpu.memory_space<vmem>>, vector<1x256x10xf32>
    %118 = vector.shape_cast %117 : vector<1x256x10xf32> to vector<256x10xf32>
    %cst_63 = arith.constant dense<0.000000e+00> : vector<1x10xf32>
    %119 = tpu.matmul %116, %118, %cst_63 {dimension_numbers = #tpu.dot_dimension_numbers<[1], [0], [0], [1], [0, 0, 1, 1], [], []>} : vector<1x256xf32>, vector<256x10xf32>, vector<1x10xf32> -> vector<1x10xf32>
    %120 = arith.addf %92, %119 : vector<1x10xf32>
    %121 = vector.extract_strided_slice %115 {offsets = [1, 0], sizes = [1, 256], strides = [1, 1]} : vector<4x256xf32> to vector<1x256xf32>
    %c5 = arith.constant 5 : index
    %c0_64 = arith.constant 0 : index
    %c0_65 = arith.constant 0 : index
    %122 = vector.load %arg4[%c5, %c0_64, %c0_65] : memref<12x256x10xf32, #tpu.memory_space<vmem>>, vector<1x256x10xf32>
    %123 = vector.shape_cast %122 : vector<1x256x10xf32> to vector<256x10xf32>
    %cst_66 = arith.constant dense<0.000000e+00> : vector<1x10xf32>
    %124 = tpu.matmul %121, %123, %cst_66 {dimension_numbers = #tpu.dot_dimension_numbers<[1], [0], [0], [1], [0, 0, 1, 1], [], []>} : vector<1x256xf32>, vector<256x10xf32>, vector<1x10xf32> -> vector<1x10xf32>
    %125 = arith.addf %120, %124 : vector<1x10xf32>
    %126 = vector.extract_strided_slice %115 {offsets = [2, 0], sizes = [1, 256], strides = [1, 1]} : vector<4x256xf32> to vector<1x256xf32>
    %c8 = arith.constant 8 : index
    %c0_67 = arith.constant 0 : index
    %c0_68 = arith.constant 0 : index
    %127 = vector.load %arg4[%c8, %c0_67, %c0_68] : memref<12x256x10xf32, #tpu.memory_space<vmem>>, vector<1x256x10xf32>
    %128 = vector.shape_cast %127 : vector<1x256x10xf32> to vector<256x10xf32>
    %cst_69 = arith.constant dense<0.000000e+00> : vector<1x10xf32>
    %129 = tpu.matmul %126, %128, %cst_69 {dimension_numbers = #tpu.dot_dimension_numbers<[1], [0], [0], [1], [0, 0, 1, 1], [], []>} : vector<1x256xf32>, vector<256x10xf32>, vector<1x10xf32> -> vector<1x10xf32>
    %130 = arith.addf %125, %129 : vector<1x10xf32>
    %131 = vector.extract_strided_slice %115 {offsets = [3, 0], sizes = [1, 256], strides = [1, 1]} : vector<4x256xf32> to vector<1x256xf32>
    %c11 = arith.constant 11 : index
    %c0_70 = arith.constant 0 : index
    %c0_71 = arith.constant 0 : index
    %132 = vector.load %arg4[%c11, %c0_70, %c0_71] : memref<12x256x10xf32, #tpu.memory_space<vmem>>, vector<1x256x10xf32>
    %133 = vector.shape_cast %132 : vector<1x256x10xf32> to vector<256x10xf32>
    %cst_72 = arith.constant dense<0.000000e+00> : vector<1x10xf32>
    %134 = tpu.matmul %131, %133, %cst_72 {dimension_numbers = #tpu.dot_dimension_numbers<[1], [0], [0], [1], [0, 0, 1, 1], [], []>} : vector<1x256xf32>, vector<256x10xf32>, vector<1x10xf32> -> vector<1x10xf32>
    %135 = arith.addf %130, %134 : vector<1x10xf32>
    %c0_73 = arith.constant 0 : index
    %c0_74 = arith.constant 0 : index
    %c0_75 = arith.constant 0 : index
    %136 = vector.load %arg6[%c0_73, %c0_74, %c0_75] : memref<1x1x10xf32, #tpu.memory_space<vmem>>, vector<1x1x10xf32>
    %137 = vector.shape_cast %136 : vector<1x1x10xf32> to vector<1x10xf32>
    %138 = vector.shape_cast %135 : vector<1x10xf32> to vector<1x1x10xf32>
    tpu.vector_store %arg6[%c0_73, %c0_74, %c0_75], %138 {strides = array<i32>} : memref<1x1x10xf32, #tpu.memory_space<vmem>>, vector<1x1x10xf32>,
    return
  }
  func.func @transform_0(%arg0: i32) -> (i32, i32, i32) {
    %c0_i32 = arith.constant 0 : i32
    %c0_i32_0 = arith.constant 0 : i32
    %c0_i32_1 = arith.constant 0 : i32
    return %arg0, %c0_i32, %c0_i32_0 : i32, i32, i32
  }
  func.func @transform_1(%arg0: i32) -> (i32, i32) {
    %c0_i32 = arith.constant 0 : i32
    %c0_i32_0 = arith.constant 0 : i32
    %c0_i32_1 = arith.constant 0 : i32
    return %c0_i32, %c0_i32_0 : i32, i32
  }
  func.func @transform_2(%arg0: i32) -> (i32, i32) {
    %c0_i32 = arith.constant 0 : i32
    %c0_i32_0 = arith.constant 0 : i32
    %c0_i32_1 = arith.constant 0 : i32
    return %c0_i32, %c0_i32_0 : i32, i32
  }
  func.func @transform_3(%arg0: i32) -> (i32, i32, i32) {
    %c0_i32 = arith.constant 0 : i32
    %c0_i32_0 = arith.constant 0 : i32
    %c0_i32_1 = arith.constant 0 : i32
    %c0_i32_2 = arith.constant 0 : i32
    return %c0_i32, %c0_i32_0, %c0_i32_1 : i32, i32, i32
  }
  func.func @transform_4(%arg0: i32) -> (i32, i32) {
    %c0_i32 = arith.constant 0 : i32
    %c0_i32_0 = arith.constant 0 : i32
    %c0_i32_1 = arith.constant 0 : i32
    return %c0_i32, %c0_i32_0 : i32, i32
  }
  func.func @transform_5(%arg0: i32) -> (i32, i32, i32) {
    %c0_i32 = arith.constant 0 : i32
    %c0_i32_0 = arith.constant 0 : i32
    %c0_i32_1 = arith.constant 0 : i32
    return %arg0, %c0_i32, %c0_i32_0 : i32, i32, i32
  }
}

</mosaic_0001>

<llo_original>
// kernel: tpu_custom_call.1
$region0: #{tpu_custom_call.1}
  #allocation0 [shape = 'u32[]', space=smem, size = 0x4, offset = 0x4, fixed_abs, tag = 'smem constant byte address 0x4 - core index']
  #allocation1 [shape = 'u32[72,128]{1,0:T(1,128)}', space=vmem, size = 0x9000, scoped, tag = 'internal scratch']
  %s0 = inlined_call_operand.vmem [shape: f32[2,4,384], index: 0, kind: input, shape index: {}]
  %s1 = inlined_call_operand.vmem [shape: f32[4,3], index: 1, kind: input, shape index: {}]
  %s2 = inlined_call_operand.vmem [shape: f32[1,3], index: 2, kind: input, shape index: {}]
  %s3 = inlined_call_operand.vmem [shape: f32[12,256,10], index: 3, kind: input, shape index: {}]
  %s4 = inlined_call_operand.vmem [shape: f32[1,10], index: 4, kind: input, shape index: {}]
  %s5 = inlined_call_operand.hbm [shape: f32[2,1,10], index: 5, kind: output, shape index: {}]
  %s6 = sld [smem:[#allocation0]]
  $region61: #{tpu_custom_call.1} parent=0
    _
  %s8 = ssub.s32 1, %s6
  %s9 = scalar_select 0, %s8, %s6
  $region1: #{tpu_custom_call.1} parent=0
    #allocation2 [shape = 'u8[2048]{0}', space=smem, size = 0x800, scoped, tag = 'input window, operand 1, single buffered']
    #allocation3 [shape = 's32[2]{0}', space=sflag, size = 0x8, scoped, tag = 'scoped memory for tpu_custom_call.1']
    #allocation4 [shape = 's32[2]{0}', space=sflag, size = 0x8, scoped, tag = 'scoped memory for tpu_custom_call.1']
    #allocation5 [shape = 'u8[512]{0}', space=smem, size = 0x200, scoped, tag = 'input window, operand 2, single buffered']
    #allocation6 [shape = 's32[1]{0}', space=sflag, size = 0x4, scoped, tag = 'scoped memory for tpu_custom_call.1']
    #allocation7 [shape = 'u8[1024]{0}', space=vmem, size = 0x400, scoped, tag = 'output window, operand 0']
    %10 = vsyncpa [#allocation4], 0
    %11 = vsyncpa [#allocation6], 0
    %12 = vsyncpa [#allocation3], 0
    %s13 = scalar_lea.sflag [#allocation3], 1
    %14 = vsyncpa %s13, 0
    loop: start=0, step=1, limit=4
    $region2: #{tpu_custom_call.1} parent=1 // loop_pre_header
      _
    $region3: #{tpu_custom_call.1} parent=1 // loop_header
      %s16 = sphi 0, %s20
      %p17 = scmp.ge.s32.totalorder %s16, 4
      %s26 = sphi 0, %s28
      %s29 = sphi 0, %s26
      %s30 = sphi 0, %s29
      %s46 = sphi 0, %s30
      %s50 = sphi 0, %s50
      %s52 = sphi 0, %s50
      %s53 = sphi 0, %s52
      %s67 = sphi 0, %s53
      %s71 = sphi 0, %s71
      %s73 = sphi 0, %s71
      %s74 = sphi 0, %s73
      %s88 = sphi 0, %s74
      %s92 = sphi 0, %s92
      %s94 = sphi 0, %s92
      %s95 = sphi 0, %s94
      %s109 = sphi 0, %s95
      %s113 = sphi 0, %s113
      %s115 = sphi 0, %s113
      %s116 = sphi 0, %s115
      %s130 = sphi 0, %s116
      %s136 = sphi 0, %s138
      %s139 = sphi 0, %s136
      %s140 = sphi 0, %s139
      %s156 = sphi 0, %s140
    $region4: #{tpu_custom_call.1} parent=1 // loop_header_branch
      %19 = sbr.rel (%p17) target = $region8
    $region5: #{tpu_custom_call.1} parent=1 // loop_body
      %s21 = ssub.s32 %s16, 1
      %s22 = ssub.s32 %s16, 2
      %s23 = sadd.s32 %s16, 1
      %s24 = ssub.s32 %s16, %s23
      %p25 = scmp.eq.s32.totalorder %s24, 0
      %s27 = sadd.s32 %s26, 1
      %s28 = scalar_select %p25, %s26, %s27
      %p31 = pneg %p25
      %p32 = scmp.eq.s32.totalorder %s16, 1
      %p33 = por %p31, %p32
      %p34 = scmp.ne.s32.totalorder %s26, %s29
      %p35 = scmp.eq.s32.totalorder %s16, 0
      %p36 = por %p34, %p35
      %p37 = scmp.ne.s32.totalorder %s26, %s29
      %p38 = scmp.eq.s32.totalorder %s21, 1
      %p39 = por %p37, %p38
      %p40 = scmp.ne.s32.totalorder %s29, %s30
      %p41 = scmp.eq.s32.totalorder %s21, 0
      %p42 = por %p40, %p41
      %p43 = scmp.ne.s32.totalorder %s29, %s30
      %p44 = scmp.eq.s32.totalorder %s22, 1
      %p45 = por %p43, %p44
      %p47 = scmp.ne.s32.totalorder %s30, %s46
      %p48 = scmp.eq.s32.totalorder %s22, 0
      %p49 = por %p47, %p48
      %s51 = sadd.s32 %s50, 1
      %p54 = scmp.eq.s32.totalorder %s16, 1
      %p55 = scmp.ne.s32.totalorder %s50, %s52
      %p56 = scmp.eq.s32.totalorder %s16, 0
      %p57 = por %p55, %p56
      %p58 = scmp.ne.s32.totalorder %s50, %s52
      %p59 = scmp.eq.s32.totalorder %s21, 1
      %p60 = por %p58, %p59
      %p61 = scmp.ne.s32.totalorder %s52, %s53
      %p62 = scmp.eq.s32.totalorder %s21, 0
      %p63 = por %p61, %p62
      %p64 = scmp.ne.s32.totalorder %s52, %s53
      %p65 = scmp.eq.s32.totalorder %s22, 1
      %p66 = por %p64, %p65
      %p68 = scmp.ne.s32.totalorder %s53, %s67
      %p69 = scmp.eq.s32.totalorder %s22, 0
      %p70 = por %p68, %p69
      %s72 = sadd.s32 %s71, 1
      %p75 = scmp.eq.s32.totalorder %s16, 1
      %p76 = scmp.ne.s32.totalorder %s71, %s73
      %p77 = scmp.eq.s32.totalorder %s16, 0
      %p78 = por %p76, %p77
      %p79 = scmp.ne.s32.totalorder %s71, %s73
      %p80 = scmp.eq.s32.totalorder %s21, 1
      %p81 = por %p79, %p80
      %p82 = scmp.ne.s32.totalorder %s73, %s74
      %p83 = scmp.eq.s32.totalorder %s21, 0
      %p84 = por %p82, %p83
      %p85 = scmp.ne.s32.totalorder %s73, %s74
      %p86 = scmp.eq.s32.totalorder %s22, 1
      %p87 = por %p85, %p86
      %p89 = scmp.ne.s32.totalorder %s74, %s88
      %p90 = scmp.eq.s32.totalorder %s22, 0
      %p91 = por %p89, %p90
      %s93 = sadd.s32 %s92, 1
      %p96 = scmp.eq.s32.totalorder %s16, 1
      %p97 = scmp.ne.s32.totalorder %s92, %s94
      %p98 = scmp.eq.s32.totalorder %s16, 0
      %p99 = por %p97, %p98
      %p100 = scmp.ne.s32.totalorder %s92, %s94
      %p101 = scmp.eq.s32.totalorder %s21, 1
      %p102 = por %p100, %p101
      %p103 = scmp.ne.s32.totalorder %s94, %s95
      %p104 = scmp.eq.s32.totalorder %s21, 0
      %p105 = por %p103, %p104
      %p106 = scmp.ne.s32.totalorder %s94, %s95
      %p107 = scmp.eq.s32.totalorder %s22, 1
      %p108 = por %p106, %p107
      %p110 = scmp.ne.s32.totalorder %s95, %s109
      %p111 = scmp.eq.s32.totalorder %s22, 0
      %p112 = por %p110, %p111
      %s114 = sadd.s32 %s113, 1
      %p117 = scmp.eq.s32.totalorder %s16, 1
      %p118 = scmp.ne.s32.totalorder %s113, %s115
      %p119 = scmp.eq.s32.totalorder %s16, 0
      %p120 = por %p118, %p119
      %p121 = scmp.ne.s32.totalorder %s113, %s115
      %p122 = scmp.eq.s32.totalorder %s21, 1
      %p123 = por %p121, %p122
      %p124 = scmp.ne.s32.totalorder %s115, %s116
      %p125 = scmp.eq.s32.totalorder %s21, 0
      %p126 = por %p124, %p125
      %p127 = scmp.ne.s32.totalorder %s115, %s116
      %p128 = scmp.eq.s32.totalorder %s22, 1
      %p129 = por %p127, %p128
      %p131 = scmp.ne.s32.totalorder %s116, %s130
      %p132 = scmp.eq.s32.totalorder %s22, 0
      %p133 = por %p131, %p132
      %s134 = ssub.s32 %s16, %s23
      %p135 = scmp.eq.s32.totalorder %s134, 0
      %s137 = sadd.s32 %s136, 1
      %s138 = scalar_select %p135, %s136, %s137
      %p141 = pneg %p135
      %p142 = scmp.eq.s32.totalorder %s16, 1
      %p143 = por %p141, %p142
      %p144 = scmp.ne.s32.totalorder %s136, %s139
      %p145 = scmp.eq.s32.totalorder %s16, 0
      %p146 = por %p144, %p145
      %p147 = scmp.ne.s32.totalorder %s136, %s139
      %p148 = scmp.eq.s32.totalorder %s21, 1
      %p149 = por %p147, %p148
      %p150 = scmp.ne.s32.totalorder %s139, %s140
      %p151 = scmp.eq.s32.totalorder %s21, 0
      %p152 = por %p150, %p151
      %p153 = scmp.ne.s32.totalorder %s139, %s140
      %p154 = scmp.eq.s32.totalorder %s22, 1
      %p155 = por %p153, %p154
      %p157 = scmp.ne.s32.totalorder %s140, %s156
      %p158 = scmp.eq.s32.totalorder %s22, 0
      %p159 = por %p157, %p158
      %p160 = scmp.le.s32.totalorder 1, %s16
      %p161 = scmp.lt.s32.totalorder %s16, 3
      %p162 = pnand %p160, %p161
      %p163 = pneg %p162
      // Predicated region
      $region9: #{tpu_custom_call.1} parent=5 // pred_check
        _
      $region10: #{tpu_custom_call.1} parent=5 // pred_check_branch
        %165 = sbr.rel (%p162) target = $region12
      $region11: #{tpu_custom_call.1} parent=5 // pred_region
        %s166 = ssub.s32 %s16, 1
        // Predicated region
        $region13: #{tpu_custom_call.1} parent=11 // pred_check
          %p167 = pneg %p63
        $region14: #{tpu_custom_call.1} parent=11 // pred_check_branch
          %169 = sbr.rel (%p167) target = $region16
        $region15: #{tpu_custom_call.1} parent=11 // pred_region
          %171 = vsyncadd [#allocation4], 0
          %s173 = sshll.u32 %s1, 4
          %s174 = int_to_ptr.vmem [resolvable:$true] %s173
          %176 = dma.vmem_to_smem %s174, 64, [#allocation2], [#allocation4]
        $region16: #{tpu_custom_call.1} parent=11 // pred_fallthru
          _
        // Predicated region
        $region17: #{tpu_custom_call.1} parent=11 // pred_check
          %p177 = pneg %p84
        $region18: #{tpu_custom_call.1} parent=11 // pred_check_branch
          %179 = sbr.rel (%p177) target = $region20
        $region19: #{tpu_custom_call.1} parent=11 // pred_region
          %181 = vsyncadd [#allocation6], 0
          %s183 = sshll.u32 %s2, 4
          %s184 = int_to_ptr.vmem [resolvable:$true] %s183
          %186 = dma.vmem_to_smem %s184, 16, [#allocation5], [#allocation6]
        $region20: #{tpu_custom_call.1} parent=11 // pred_fallthru
          _
        // Predicated region
        $region21: #{tpu_custom_call.1} parent=11 // pred_check
          %p187 = pneg %p105
        $region22: #{tpu_custom_call.1} parent=11 // pred_check_branch
          %189 = sbr.rel (%p187) target = $region24
        $region23: #{tpu_custom_call.1} parent=11 // pred_region
          _
        $region24: #{tpu_custom_call.1} parent=11 // pred_fallthru
          _
        // Predicated region
        $region25: #{tpu_custom_call.1} parent=11 // pred_check
          %p190 = pneg %p126
        $region26: #{tpu_custom_call.1} parent=11 // pred_check_branch
          %192 = sbr.rel (%p190) target = $region28
        $region27: #{tpu_custom_call.1} parent=11 // pred_region
          _
        $region28: #{tpu_custom_call.1} parent=11 // pred_fallthru
          _
      $region12: #{tpu_custom_call.1} parent=5 // pred_fallthru
        _
      %p193 = scmp.lt.s32.totalorder %s16, 2
      // Predicated region
      $region29: #{tpu_custom_call.1} parent=5 // pred_check
        %p194 = pneg %p193
      $region30: #{tpu_custom_call.1} parent=5 // pred_check_branch
        %196 = sbr.rel (%p194) target = $region32
      $region31: #{tpu_custom_call.1} parent=5 // pred_region
        // Predicated region
        $region33: #{tpu_custom_call.1} parent=31 // pred_check
          %p197 = pneg %p36
        $region34: #{tpu_custom_call.1} parent=31 // pred_check_branch
          %199 = sbr.rel (%p197) target = $region36
        $region35: #{tpu_custom_call.1} parent=31 // pred_region
          %p200 = scmp.lt.s32.totalorder %s16, 1
          %s201 = scalar_select %p200, %s16, 1
          %s202 = smul.addr %s201, 3
          %s203 = smul.addr %s202, 4
          %s204 = scalar_lea.vmem %s0, %s203
        $region36: #{tpu_custom_call.1} parent=31 // pred_fallthru
          _
      $region32: #{tpu_custom_call.1} parent=5 // pred_fallthru
        _
      %p205 = scmp.le.s32.totalorder 1, %s16
      %p206 = scmp.lt.s32.totalorder %s16, 3
      %p207 = pnand %p205, %p206
      %p208 = pneg %p207
      // Predicated region
      $region37: #{tpu_custom_call.1} parent=5 // pred_check
        _
      $region38: #{tpu_custom_call.1} parent=5 // pred_check_branch
        %210 = sbr.rel (%p207) target = $region40
      $region39: #{tpu_custom_call.1} parent=5 // pred_region
        %s211 = ssub.s32 %s16, 1
        // Predicated region
        $region41: #{tpu_custom_call.1} parent=39 // pred_check
          %p212 = pneg %p63
        $region42: #{tpu_custom_call.1} parent=39 // pred_check_branch
          %214 = sbr.rel (%p212) target = $region44
        $region43: #{tpu_custom_call.1} parent=39 // pred_region
          %216 = dma.done [#allocation4], 64
        $region44: #{tpu_custom_call.1} parent=39 // pred_fallthru
          _
        // Predicated region
        $region45: #{tpu_custom_call.1} parent=39 // pred_check
          %p217 = pneg %p84
        $region46: #{tpu_custom_call.1} parent=39 // pred_check_branch
          %219 = sbr.rel (%p217) target = $region48
        $region47: #{tpu_custom_call.1} parent=39 // pred_region
          %221 = dma.done [#allocation6], 16
        $region48: #{tpu_custom_call.1} parent=39 // pred_fallthru
          _
        %222 = sfence
        %p223 = scmp.lt.s32.totalorder %s21, 1
        %s224 = scalar_select %p223, %s21, 1
        %s225 = smul.addr %s224, 3
        %s226 = smul.addr %s225, 4
        %s227 = scalar_lea.vmem %s0, %s226
        %p228 = pneg %p42
        %p229 = pneg %p39
        %p230 = pneg %p63
        %p231 = pneg %p60
        %p232 = pneg %p84
        %p233 = pneg %p81
        %p234 = pneg %p105
        %p235 = pneg %p102
        %p236 = pneg %p126
        %p237 = pneg %p123
        %p238 = pneg %p152
        %p239 = pneg %p149
        %s240 = sand.u32 %s139, 1
        %s241 = scalar_lea.sflag [#allocation3], %s240
        %s242 = sand.u32 %s139, 1
        %s243 = scalar_lea.vmem [#allocation7], %s242
        %p244 = scmp.lt.s32.totalorder %s21, 1
        %s245 = scalar_select %p244, %s21, 1
        %s246 = smul.addr %s245, 3
        %s247 = smul.addr %s246, 4
        %s248 = scalar_lea.vmem %s0, %s247
        %v249 = vld [vmem:[%s248] sm:$0xff]
        %v250 = vld [vmem:[%s248 + $0x8] sm:$0xf]
        %v251 = vld [vmem:[%s4] sm:$0x1]
        %s252 = sld [smem:[#allocation2]]
        %v253 = vstv %s252
        %v254 = vmul.f32 %v249, %v253
        %s255 = sld [smem:[#allocation2 + $0x80]]
        %v256 = vstv %s255
        %v257 = vmul.f32 %v249, %v256
        %v258 = vmul.f32 %v250, %v256
        %261 = vrot.lane.b32.xlu0 %v257, 127
        %v262 = vpop.permute.xlu0 %261
        %263 = vrot.lane.b32.xlu0 %v258, 127
        %v264 = vpop.permute.xlu0 %263
        %v265 = vrot.slane %v262, 4
        %v266 = vrot.slane %v264, 4
        %vm267 = vcmask 1043456
        %v268 = vsel %vm267, %v265, %v266
        %vm269 = vcmask 1039360
        %v270 = vsel %vm269, %v262, %v268
        %v272 = vadd.f32 %v254, %v270
        %s273 = sld [smem:[#allocation2 + $0x100]]
        %v274 = vstv %s273
        %v275 = vmul.f32 %v249, %v274
        %v276 = vmul.f32 %v250, %v274
        %279 = vrot.lane.b32.xlu0 %v275, 112
        %v280 = vpop.permute.xlu0 %279
        %281 = vrot.lane.b32.xlu0 %v276, 112
        %v282 = vpop.permute.xlu0 %281
        %v283 = vrot.slane %v280, 4
        %v284 = vrot.slane %v282, 4
        %v285 = vsel %vm267, %v283, %v284
        %vm286 = vcmask 916480
        %v287 = vsel %vm286, %v280, %v285
        %v289 = vadd.f32 %v272, %v287
        %s290 = sld [smem:[#allocation2 + $0x180]]
        %v291 = vstv %s290
        %v292 = vmul.f32 %v249, %v291
        %v293 = vmul.f32 %v250, %v291
        %296 = vrot.lane.b32.xlu0 %v292, 111
        %v297 = vpop.permute.xlu0 %296
        %298 = vrot.lane.b32.xlu0 %v293, 111
        %v299 = vpop.permute.xlu0 %298
        %v300 = vrot.slane %v297, 4
        %v301 = vrot.slane %v299, 4
        %v302 = vsel %vm267, %v300, %v301
        %vm303 = vcmask 908288
        %v304 = vsel %vm303, %v297, %v302
        %v306 = vadd.f32 %v289, %v304
        %s307 = sld [smem:[#allocation5]]
        %v308 = vstv %s307
        %v309 = vadd.f32 %v306, %v308
        %v310 = vxor.u32 %v309, 2147483648
        %v311 = vmul.f32 %v310, 1.442695
        %v312 = vpow.pop %v311
        %v313 = vadd.f32 %v312, 1.0
        %v314 = vrcp.pop %v313
        %v315 = vmul.f32 %v313, %v314
        %v316 = vsub.f32 1.0, %v315
        %v317 = vmul.f32 %v314, %v316
        %v318 = vadd.f32 %v314, %v317
        %vm319 = vweird.f32 %v313
        %vm320 = vweird.f32 %v314
        %vm321 = vmor %vm319, %vm320
        %v322 = vsel %vm321, %v314, %v318
        %v323 = vand.u32 2147483647, %v313
        %vm324 = vcmp.eq.f32.partialorder %v323, 8.507059e+37
        %v325 = vand.u32 %v313, 2147483648
        %v326 = vor.u32 1.1754944e-38, %v325
        %v327 = vsel %vm324, %v326, %v322
        %v328 = vmul.f32 1.0, %v327
        %v329 = vld [vmem:[%s3] sm:$0xff]
        %v330 = vld [vmem:[%s3 + $0x8] sm:$0xff]
        %v331 = vld [vmem:[%s3 + $0x10] sm:$0xff]
        %v332 = vld [vmem:[%s3 + $0x18] sm:$0xff]
        %v333 = vld [vmem:[%s3 + $0x20] sm:$0xff]
        %v334 = vld [vmem:[%s3 + $0x28] sm:$0xff]
        %v335 = vld [vmem:[%s3 + $0x30] sm:$0xff]
        %v336 = vld [vmem:[%s3 + $0x38] sm:$0xff]
        %v337 = vld [vmem:[%s3 + $0x40] sm:$0xff]
        %v338 = vld [vmem:[%s3 + $0x48] sm:$0xff]
        %v339 = vld [vmem:[%s3 + $0x50] sm:$0xff]
        %v340 = vld [vmem:[%s3 + $0x58] sm:$0xff]
        %v341 = vld [vmem:[%s3 + $0x60] sm:$0xff]
        %v342 = vld [vmem:[%s3 + $0x68] sm:$0xff]
        %v343 = vld [vmem:[%s3 + $0x70] sm:$0xff]
        %v344 = vld [vmem:[%s3 + $0x78] sm:$0xff]
        %v345 = vld [vmem:[%s3 + $0x80] sm:$0xff]
        %v346 = vld [vmem:[%s3 + $0x88] sm:$0xff]
        %v347 = vld [vmem:[%s3 + $0x90] sm:$0xff]
        %v348 = vld [vmem:[%s3 + $0x98] sm:$0xff]
        %v349 = vld [vmem:[%s3 + $0xa0] sm:$0xff]
        %v350 = vld [vmem:[%s3 + $0xa8] sm:$0xff]
        %v351 = vld [vmem:[%s3 + $0xb0] sm:$0xff]
        %v352 = vld [vmem:[%s3 + $0xb8] sm:$0xff]
        %v353 = vld [vmem:[%s3 + $0xc0] sm:$0xff]
        %v354 = vld [vmem:[%s3 + $0xc8] sm:$0xff]
        %v355 = vld [vmem:[%s3 + $0xd0] sm:$0xff]
        %v356 = vld [vmem:[%s3 + $0xd8] sm:$0xff]
        %v357 = vld [vmem:[%s3 + $0xe0] sm:$0xff]
        %v358 = vld [vmem:[%s3 + $0xe8] sm:$0xff]
        %v359 = vld [vmem:[%s3 + $0xf0] sm:$0xff]
        %v360 = vld [vmem:[%s3 + $0xf8] sm:$0xff]
        %v362 = vperm.slane %v328, 0
        %v363 = vperm.slane %v328, 4
        %366 = vmatpush.msra.mxu0 %v344
        %367 = vmatpush.msra.mxu0 %v343
        %368 = vmatpush.msra.mxu0 %v342
        %369 = vmatpush.msra.mxu0 %v341
        %370 = vmatpush.msra.mxu0 %v340
        %371 = vmatpush.msra.mxu0 %v339
        %372 = vmatpush.msra.mxu0 %v338
        %373 = vmatpush.msra.mxu0 %v337
        %374 = vmatpush.msra.mxu0 %v336
        %375 = vmatpush.msra.mxu0 %v335
        %376 = vmatpush.msra.mxu0 %v334
        %377 = vmatpush.msra.mxu0 %v333
        %378 = vmatpush.msra.mxu0 %v332
        %379 = vmatpush.msra.mxu0 %v331
        %380 = vmatpush.msra.mxu0 %v330
        %381 = vmatpush.msra.mxu0 %v329
        %382 = vmatmul.f32.gmra.mxu0 %v362
        %v383 = vpop.f32.mrf.mxu0
        %v384 = vadd.f32 0.0, %v383
        %385 = vdwg.mxu0
        %386 = vmatpush.msra.mxu0 %v360
        %387 = vmatpush.msra.mxu0 %v359
        %388 = vmatpush.msra.mxu0 %v358
        %389 = vmatpush.msra.mxu0 %v357
        %390 = vmatpush.msra.mxu0 %v356
        %391 = vmatpush.msra.mxu0 %v355
        %392 = vmatpush.msra.mxu0 %v354
        %393 = vmatpush.msra.mxu0 %v353
        %394 = vmatpush.msra.mxu0 %v352
        %395 = vmatpush.msra.mxu0 %v351
        %396 = vmatpush.msra.mxu0 %v350
        %397 = vmatpush.msra.mxu0 %v349
        %398 = vmatpush.msra.mxu0 %v348
        %399 = vmatpush.msra.mxu0 %v347
        %400 = vmatpush.msra.mxu0 %v346
        %401 = vmatpush.msra.mxu0 %v345
        %402 = vmatmul.f32.gmra.mxu0 %v363
        %v403 = vpop.f32.mrf.mxu0
        %v404 = vadd.f32 %v384, %v403
        %405 = vdwg.mxu0
        %v406 = vadd.f32 %v251, %v404
        %s407 = scalar_lea.vmem %s3, 768
        %v408 = vld [vmem:[%s407] sm:$0xff]
        %v409 = vld [vmem:[%s407 + $0x8] sm:$0xff]
        %v410 = vld [vmem:[%s407 + $0x10] sm:$0xff]
        %v411 = vld [vmem:[%s407 + $0x18] sm:$0xff]
        %v412 = vld [vmem:[%s407 + $0x20] sm:$0xff]
        %v413 = vld [vmem:[%s407 + $0x28] sm:$0xff]
        %v414 = vld [vmem:[%s407 + $0x30] sm:$0xff]
        %v415 = vld [vmem:[%s407 + $0x38] sm:$0xff]
        %v416 = vld [vmem:[%s407 + $0x40] sm:$0xff]
        %v417 = vld [vmem:[%s407 + $0x48] sm:$0xff]
        %v418 = vld [vmem:[%s407 + $0x50] sm:$0xff]
        %v419 = vld [vmem:[%s407 + $0x58] sm:$0xff]
        %v420 = vld [vmem:[%s407 + $0x60] sm:$0xff]
        %v421 = vld [vmem:[%s407 + $0x68] sm:$0xff]
        %v422 = vld [vmem:[%s407 + $0x70] sm:$0xff]
        %v423 = vld [vmem:[%s407 + $0x78] sm:$0xff]
        %v424 = vld [vmem:[%s407 + $0x80] sm:$0xff]
        %v425 = vld [vmem:[%s407 + $0x88] sm:$0xff]
        %v426 = vld [vmem:[%s407 + $0x90] sm:$0xff]
        %v427 = vld [vmem:[%s407 + $0x98] sm:$0xff]
        %v428 = vld [vmem:[%s407 + $0xa0] sm:$0xff]
        %v429 = vld [vmem:[%s407 + $0xa8] sm:$0xff]
        %v430 = vld [vmem:[%s407 + $0xb0] sm:$0xff]
        %v431 = vld [vmem:[%s407 + $0xb8] sm:$0xff]
        %v432 = vld [vmem:[%s407 + $0xc0] sm:$0xff]
        %v433 = vld [vmem:[%s407 + $0xc8] sm:$0xff]
        %v434 = vld [vmem:[%s407 + $0xd0] sm:$0xff]
        %v435 = vld [vmem:[%s407 + $0xd8] sm:$0xff]
        %v436 = vld [vmem:[%s407 + $0xe0] sm:$0xff]
        %v437 = vld [vmem:[%s407 + $0xe8] sm:$0xff]
        %v438 = vld [vmem:[%s407 + $0xf0] sm:$0xff]
        %v439 = vld [vmem:[%s407 + $0xf8] sm:$0xff]
        %v440 = vperm.slane %v328, 1
        %v441 = vperm.slane %v328, 5
        %444 = vmatpush.msra.mxu0 %v423
        %445 = vmatpush.msra.mxu0 %v422
        %446 = vmatpush.msra.mxu0 %v421
        %447 = vmatpush.msra.mxu0 %v420
        %448 = vmatpush.msra.mxu0 %v419
        %449 = vmatpush.msra.mxu0 %v418
        %450 = vmatpush.msra.mxu0 %v417
        %451 = vmatpush.msra.mxu0 %v416
        %452 = vmatpush.msra.mxu0 %v415
        %453 = vmatpush.msra.mxu0 %v414
        %454 = vmatpush.msra.mxu0 %v413
        %455 = vmatpush.msra.mxu0 %v412
        %456 = vmatpush.msra.mxu0 %v411
        %457 = vmatpush.msra.mxu0 %v410
        %458 = vmatpush.msra.mxu0 %v409
        %459 = vmatpush.msra.mxu0 %v408
        %460 = vmatmul.f32.gmra.mxu0 %v440
        %v461 = vpop.f32.mrf.mxu0
        %v462 = vadd.f32 0.0, %v461
        %463 = vdwg.mxu0
        %464 = vmatpush.msra.mxu0 %v439
        %465 = vmatpush.msra.mxu0 %v438
        %466 = vmatpush.msra.mxu0 %v437
        %467 = vmatpush.msra.mxu0 %v436
        %468 = vmatpush.msra.mxu0 %v435
        %469 = vmatpush.msra.mxu0 %v434
        %470 = vmatpush.msra.mxu0 %v433
        %471 = vmatpush.msra.mxu0 %v432
        %472 = vmatpush.msra.mxu0 %v431
        %473 = vmatpush.msra.mxu0 %v430
        %474 = vmatpush.msra.mxu0 %v429
        %475 = vmatpush.msra.mxu0 %v428
        %476 = vmatpush.msra.mxu0 %v427
        %477 = vmatpush.msra.mxu0 %v426
        %478 = vmatpush.msra.mxu0 %v425
        %479 = vmatpush.msra.mxu0 %v424
        %480 = vmatmul.f32.gmra.mxu0 %v441
        %v481 = vpop.f32.mrf.mxu0
        %v482 = vadd.f32 %v462, %v481
        %483 = vdwg.mxu0
        %v484 = vadd.f32 %v406, %v482
        %s485 = scalar_lea.vmem %s3, 1536
        %v486 = vld [vmem:[%s485] sm:$0xff]
        %v487 = vld [vmem:[%s485 + $0x8] sm:$0xff]
        %v488 = vld [vmem:[%s485 + $0x10] sm:$0xff]
        %v489 = vld [vmem:[%s485 + $0x18] sm:$0xff]
        %v490 = vld [vmem:[%s485 + $0x20] sm:$0xff]
        %v491 = vld [vmem:[%s485 + $0x28] sm:$0xff]
        %v492 = vld [vmem:[%s485 + $0x30] sm:$0xff]
        %v493 = vld [vmem:[%s485 + $0x38] sm:$0xff]
        %v494 = vld [vmem:[%s485 + $0x40] sm:$0xff]
        %v495 = vld [vmem:[%s485 + $0x48] sm:$0xff]
        %v496 = vld [vmem:[%s485 + $0x50] sm:$0xff]
        %v497 = vld [vmem:[%s485 + $0x58] sm:$0xff]
        %v498 = vld [vmem:[%s485 + $0x60] sm:$0xff]
        %v499 = vld [vmem:[%s485 + $0x68] sm:$0xff]
        %v500 = vld [vmem:[%s485 + $0x70] sm:$0xff]
        %v501 = vld [vmem:[%s485 + $0x78] sm:$0xff]
        %v502 = vld [vmem:[%s485 + $0x80] sm:$0xff]
        %v503 = vld [vmem:[%s485 + $0x88] sm:$0xff]
        %v504 = vld [vmem:[%s485 + $0x90] sm:$0xff]
        %v505 = vld [vmem:[%s485 + $0x98] sm:$0xff]
        %v506 = vld [vmem:[%s485 + $0xa0] sm:$0xff]
        %v507 = vld [vmem:[%s485 + $0xa8] sm:$0xff]
        %v508 = vld [vmem:[%s485 + $0xb0] sm:$0xff]
        %v509 = vld [vmem:[%s485 + $0xb8] sm:$0xff]
        %v510 = vld [vmem:[%s485 + $0xc0] sm:$0xff]
        %v511 = vld [vmem:[%s485 + $0xc8] sm:$0xff]
        %v512 = vld [vmem:[%s485 + $0xd0] sm:$0xff]
        %v513 = vld [vmem:[%s485 + $0xd8] sm:$0xff]
        %v514 = vld [vmem:[%s485 + $0xe0] sm:$0xff]
        %v515 = vld [vmem:[%s485 + $0xe8] sm:$0xff]
        %v516 = vld [vmem:[%s485 + $0xf0] sm:$0xff]
        %v517 = vld [vmem:[%s485 + $0xf8] sm:$0xff]
        %v518 = vperm.slane %v328, 2
        %v519 = vperm.slane %v328, 6
        %522 = vmatpush.msra.mxu0 %v501
        %523 = vmatpush.msra.mxu0 %v500
        %524 = vmatpush.msra.mxu0 %v499
        %525 = vmatpush.msra.mxu0 %v498
        %526 = vmatpush.msra.mxu0 %v497
        %527 = vmatpush.msra.mxu0 %v496
        %528 = vmatpush.msra.mxu0 %v495
        %529 = vmatpush.msra.mxu0 %v494
        %530 = vmatpush.msra.mxu0 %v493
        %531 = vmatpush.msra.mxu0 %v492
        %532 = vmatpush.msra.mxu0 %v491
        %533 = vmatpush.msra.mxu0 %v490
        %534 = vmatpush.msra.mxu0 %v489
        %535 = vmatpush.msra.mxu0 %v488
        %536 = vmatpush.msra.mxu0 %v487
        %537 = vmatpush.msra.mxu0 %v486
        %538 = vmatmul.f32.gmra.mxu0 %v518
        %v539 = vpop.f32.mrf.mxu0
        %v540 = vadd.f32 0.0, %v539
        %541 = vdwg.mxu0
        %542 = vmatpush.msra.mxu0 %v517
        %543 = vmatpush.msra.mxu0 %v516
        %544 = vmatpush.msra.mxu0 %v515
        %545 = vmatpush.msra.mxu0 %v514
        %546 = vmatpush.msra.mxu0 %v513
        %547 = vmatpush.msra.mxu0 %v512
        %548 = vmatpush.msra.mxu0 %v511
        %549 = vmatpush.msra.mxu0 %v510
        %550 = vmatpush.msra.mxu0 %v509
        %551 = vmatpush.msra.mxu0 %v508
        %552 = vmatpush.msra.mxu0 %v507
        %553 = vmatpush.msra.mxu0 %v506
        %554 = vmatpush.msra.mxu0 %v505
        %555 = vmatpush.msra.mxu0 %v504
        %556 = vmatpush.msra.mxu0 %v503
        %557 = vmatpush.msra.mxu0 %v502
        %558 = vmatmul.f32.gmra.mxu0 %v519
        %v559 = vpop.f32.mrf.mxu0
        %v560 = vadd.f32 %v540, %v559
        %561 = vdwg.mxu0
        %v562 = vadd.f32 %v484, %v560
        %s563 = scalar_lea.vmem %s3, 2304
        %v564 = vld [vmem:[%s563] sm:$0xff]
        %v565 = vld [vmem:[%s563 + $0x8] sm:$0xff]
        %v566 = vld [vmem:[%s563 + $0x10] sm:$0xff]
        %v567 = vld [vmem:[%s563 + $0x18] sm:$0xff]
        %v568 = vld [vmem:[%s563 + $0x20] sm:$0xff]
        %v569 = vld [vmem:[%s563 + $0x28] sm:$0xff]
        %v570 = vld [vmem:[%s563 + $0x30] sm:$0xff]
        %v571 = vld [vmem:[%s563 + $0x38] sm:$0xff]
        %v572 = vld [vmem:[%s563 + $0x40] sm:$0xff]
        %v573 = vld [vmem:[%s563 + $0x48] sm:$0xff]
        %v574 = vld [vmem:[%s563 + $0x50] sm:$0xff]
        %v575 = vld [vmem:[%s563 + $0x58] sm:$0xff]
        %v576 = vld [vmem:[%s563 + $0x60] sm:$0xff]
        %v577 = vld [vmem:[%s563 + $0x68] sm:$0xff]
        %v578 = vld [vmem:[%s563 + $0x70] sm:$0xff]
        %v579 = vld [vmem:[%s563 + $0x78] sm:$0xff]
        %v580 = vld [vmem:[%s563 + $0x80] sm:$0xff]
        %v581 = vld [vmem:[%s563 + $0x88] sm:$0xff]
        %v582 = vld [vmem:[%s563 + $0x90] sm:$0xff]
        %v583 = vld [vmem:[%s563 + $0x98] sm:$0xff]
        %v584 = vld [vmem:[%s563 + $0xa0] sm:$0xff]
        %v585 = vld [vmem:[%s563 + $0xa8] sm:$0xff]
        %v586 = vld [vmem:[%s563 + $0xb0] sm:$0xff]
        %v587 = vld [vmem:[%s563 + $0xb8] sm:$0xff]
        %v588 = vld [vmem:[%s563 + $0xc0] sm:$0xff]
        %v589 = vld [vmem:[%s563 + $0xc8] sm:$0xff]
        %v590 = vld [vmem:[%s563 + $0xd0] sm:$0xff]
        %v591 = vld [vmem:[%s563 + $0xd8] sm:$0xff]
        %v592 = vld [vmem:[%s563 + $0xe0] sm:$0xff]
        %v593 = vld [vmem:[%s563 + $0xe8] sm:$0xff]
        %v594 = vld [vmem:[%s563 + $0xf0] sm:$0xff]
        %v595 = vld [vmem:[%s563 + $0xf8] sm:$0xff]
        %v596 = vperm.slane %v328, 3
        %v597 = vperm.slane %v328, 7
        %600 = vmatpush.msra.mxu0 %v579
        %601 = vmatpush.msra.mxu0 %v578
        %602 = vmatpush.msra.mxu0 %v577
        %603 = vmatpush.msra.mxu0 %v576
        %604 = vmatpush.msra.mxu0 %v575
        %605 = vmatpush.msra.mxu0 %v574
        %606 = vmatpush.msra.mxu0 %v573
        %607 = vmatpush.msra.mxu0 %v572
        %608 = vmatpush.msra.mxu0 %v571
        %609 = vmatpush.msra.mxu0 %v570
        %610 = vmatpush.msra.mxu0 %v569
        %611 = vmatpush.msra.mxu0 %v568
        %612 = vmatpush.msra.mxu0 %v567
        %613 = vmatpush.msra.mxu0 %v566
        %614 = vmatpush.msra.mxu0 %v565
        %615 = vmatpush.msra.mxu0 %v564
        %616 = vmatmul.f32.gmra.mxu0 %v596
        %v617 = vpop.f32.mrf.mxu0
        %v618 = vadd.f32 0.0, %v617
        %619 = vdwg.mxu0
        %620 = vmatpush.msra.mxu0 %v595
        %621 = vmatpush.msra.mxu0 %v594
        %622 = vmatpush.msra.mxu0 %v593
        %623 = vmatpush.msra.mxu0 %v592
        %624 = vmatpush.msra.mxu0 %v591
        %625 = vmatpush.msra.mxu0 %v590
        %626 = vmatpush.msra.mxu0 %v589
        %627 = vmatpush.msra.mxu0 %v588
        %628 = vmatpush.msra.mxu0 %v587
        %629 = vmatpush.msra.mxu0 %v586
        %630 = vmatpush.msra.mxu0 %v585
        %631 = vmatpush.msra.mxu0 %v584
        %632 = vmatpush.msra.mxu0 %v583
        %633 = vmatpush.msra.mxu0 %v582
        %634 = vmatpush.msra.mxu0 %v581
        %635 = vmatpush.msra.mxu0 %v580
        %636 = vmatmul.f32.gmra.mxu0 %v597
        %v637 = vpop.f32.mrf.mxu0
        %v638 = vadd.f32 %v618, %v637
        %639 = vdwg.mxu0
        %v640 = vadd.f32 %v562, %v638
        %s641 = sld [smem:[#allocation2 + $0x1]]
        %v642 = vstv %s641
        %v643 = vmul.f32 %v249, %v642
        %s644 = sld [smem:[#allocation2 + $0x81]]
        %v645 = vstv %s644
        %v646 = vmul.f32 %v249, %v645
        %v647 = vmul.f32 %v250, %v645
        %650 = vrot.lane.b32.xlu0 %v646, 127
        %v651 = vpop.permute.xlu0 %650
        %652 = vrot.lane.b32.xlu0 %v647, 127
        %v653 = vpop.permute.xlu0 %652
        %v654 = vrot.slane %v651, 4
        %v655 = vrot.slane %v653, 4
        %v656 = vsel %vm267, %v654, %v655
        %v657 = vsel %vm269, %v651, %v656
        %v659 = vadd.f32 %v643, %v657
        %s660 = sld [smem:[#allocation2 + $0x101]]
        %v661 = vstv %s660
        %v662 = vmul.f32 %v249, %v661
        %v663 = vmul.f32 %v250, %v661
        %666 = vrot.lane.b32.xlu0 %v662, 112
        %v667 = vpop.permute.xlu0 %666
        %668 = vrot.lane.b32.xlu0 %v663, 112
        %v669 = vpop.permute.xlu0 %668
        %v670 = vrot.slane %v667, 4
        %v671 = vrot.slane %v669, 4
        %v672 = vsel %vm267, %v670, %v671
        %v673 = vsel %vm286, %v667, %v672
        %v675 = vadd.f32 %v659, %v673
        %s676 = sld [smem:[#allocation2 + $0x181]]
        %v677 = vstv %s676
        %v678 = vmul.f32 %v249, %v677
        %v679 = vmul.f32 %v250, %v677
        %682 = vrot.lane.b32.xlu0 %v678, 111
        %v683 = vpop.permute.xlu0 %682
        %684 = vrot.lane.b32.xlu0 %v679, 111
        %v685 = vpop.permute.xlu0 %684
        %v686 = vrot.slane %v683, 4
        %v687 = vrot.slane %v685, 4
        %v688 = vsel %vm267, %v686, %v687
        %v689 = vsel %vm303, %v683, %v688
        %v691 = vadd.f32 %v675, %v689
        %s692 = sld [smem:[#allocation5 + $0x1]]
        %v693 = vstv %s692
        %v694 = vadd.f32 %v691, %v693
        %v695 = vxor.u32 %v694, 2147483648
        %v696 = vmul.f32 %v695, 1.442695
        %v697 = vpow.pop %v696
        %v698 = vadd.f32 %v697, 1.0
        %v699 = vrcp.pop %v698
        %v700 = vmul.f32 %v698, %v699
        %v701 = vsub.f32 1.0, %v700
        %v702 = vmul.f32 %v699, %v701
        %v703 = vadd.f32 %v699, %v702
        %vm704 = vweird.f32 %v698
        %vm705 = vweird.f32 %v699
        %vm706 = vmor %vm704, %vm705
        %v707 = vsel %vm706, %v699, %v703
        %v708 = vand.u32 2147483647, %v698
        %vm709 = vcmp.eq.f32.partialorder %v708, 8.507059e+37
        %v710 = vand.u32 %v698, 2147483648
        %v711 = vor.u32 1.1754944e-38, %v710
        %v712 = vsel %vm709, %v711, %v707
        %v713 = vmul.f32 1.0, %v712
        %s714 = scalar_lea.vmem %s3, 256
        %v715 = vld [vmem:[%s714] sm:$0xff]
        %v716 = vld [vmem:[%s714 + $0x8] sm:$0xff]
        %v717 = vld [vmem:[%s714 + $0x10] sm:$0xff]
        %v718 = vld [vmem:[%s714 + $0x18] sm:$0xff]
        %v719 = vld [vmem:[%s714 + $0x20] sm:$0xff]
        %v720 = vld [vmem:[%s714 + $0x28] sm:$0xff]
        %v721 = vld [vmem:[%s714 + $0x30] sm:$0xff]
        %v722 = vld [vmem:[%s714 + $0x38] sm:$0xff]
        %v723 = vld [vmem:[%s714 + $0x40] sm:$0xff]
        %v724 = vld [vmem:[%s714 + $0x48] sm:$0xff]
        %v725 = vld [vmem:[%s714 + $0x50] sm:$0xff]
        %v726 = vld [vmem:[%s714 + $0x58] sm:$0xff]
        %v727 = vld [vmem:[%s714 + $0x60] sm:$0xff]
        %v728 = vld [vmem:[%s714 + $0x68] sm:$0xff]
        %v729 = vld [vmem:[%s714 + $0x70] sm:$0xff]
        %v730 = vld [vmem:[%s714 + $0x78] sm:$0xff]
        %v731 = vld [vmem:[%s714 + $0x80] sm:$0xff]
        %v732 = vld [vmem:[%s714 + $0x88] sm:$0xff]
        %v733 = vld [vmem:[%s714 + $0x90] sm:$0xff]
        %v734 = vld [vmem:[%s714 + $0x98] sm:$0xff]
        %v735 = vld [vmem:[%s714 + $0xa0] sm:$0xff]
        %v736 = vld [vmem:[%s714 + $0xa8] sm:$0xff]
        %v737 = vld [vmem:[%s714 + $0xb0] sm:$0xff]
        %v738 = vld [vmem:[%s714 + $0xb8] sm:$0xff]
        %v739 = vld [vmem:[%s714 + $0xc0] sm:$0xff]
        %v740 = vld [vmem:[%s714 + $0xc8] sm:$0xff]
        %v741 = vld [vmem:[%s714 + $0xd0] sm:$0xff]
        %v742 = vld [vmem:[%s714 + $0xd8] sm:$0xff]
        %v743 = vld [vmem:[%s714 + $0xe0] sm:$0xff]
        %v744 = vld [vmem:[%s714 + $0xe8] sm:$0xff]
        %v745 = vld [vmem:[%s714 + $0xf0] sm:$0xff]
        %v746 = vld [vmem:[%s714 + $0xf8] sm:$0xff]
        %v748 = vperm.slane %v713, 0
        %v749 = vperm.slane %v713, 4
        %752 = vmatpush.msra.mxu0 %v730
        %753 = vmatpush.msra.mxu0 %v729
        %754 = vmatpush.msra.mxu0 %v728
        %755 = vmatpush.msra.mxu0 %v727
        %756 = vmatpush.msra.mxu0 %v726
        %757 = vmatpush.msra.mxu0 %v725
        %758 = vmatpush.msra.mxu0 %v724
        %759 = vmatpush.msra.mxu0 %v723
        %760 = vmatpush.msra.mxu0 %v722
        %761 = vmatpush.msra.mxu0 %v721
        %762 = vmatpush.msra.mxu0 %v720
        %763 = vmatpush.msra.mxu0 %v719
        %764 = vmatpush.msra.mxu0 %v718
        %765 = vmatpush.msra.mxu0 %v717
        %766 = vmatpush.msra.mxu0 %v716
        %767 = vmatpush.msra.mxu0 %v715
        %768 = vmatmul.f32.gmra.mxu0 %v748
        %v769 = vpop.f32.mrf.mxu0
        %v770 = vadd.f32 0.0, %v769
        %771 = vdwg.mxu0
        %772 = vmatpush.msra.mxu0 %v746
        %773 = vmatpush.msra.mxu0 %v745
        %774 = vmatpush.msra.mxu0 %v744
        %775 = vmatpush.msra.mxu0 %v743
        %776 = vmatpush.msra.mxu0 %v742
        %777 = vmatpush.msra.mxu0 %v741
        %778 = vmatpush.msra.mxu0 %v740
        %779 = vmatpush.msra.mxu0 %v739
        %780 = vmatpush.msra.mxu0 %v738
        %781 = vmatpush.msra.mxu0 %v737
        %782 = vmatpush.msra.mxu0 %v736
        %783 = vmatpush.msra.mxu0 %v735
        %784 = vmatpush.msra.mxu0 %v734
        %785 = vmatpush.msra.mxu0 %v733
        %786 = vmatpush.msra.mxu0 %v732
        %787 = vmatpush.msra.mxu0 %v731
        %788 = vmatmul.f32.gmra.mxu0 %v749
        %v789 = vpop.f32.mrf.mxu0
        %v790 = vadd.f32 %v770, %v789
        %791 = vdwg.mxu0
        %v792 = vadd.f32 %v640, %v790
        %s793 = scalar_lea.vmem %s3, 1024
        %v794 = vld [vmem:[%s793] sm:$0xff]
        %v795 = vld [vmem:[%s793 + $0x8] sm:$0xff]
        %v796 = vld [vmem:[%s793 + $0x10] sm:$0xff]
        %v797 = vld [vmem:[%s793 + $0x18] sm:$0xff]
        %v798 = vld [vmem:[%s793 + $0x20] sm:$0xff]
        %v799 = vld [vmem:[%s793 + $0x28] sm:$0xff]
        %v800 = vld [vmem:[%s793 + $0x30] sm:$0xff]
        %v801 = vld [vmem:[%s793 + $0x38] sm:$0xff]
        %v802 = vld [vmem:[%s793 + $0x40] sm:$0xff]
        %v803 = vld [vmem:[%s793 + $0x48] sm:$0xff]
        %v804 = vld [vmem:[%s793 + $0x50] sm:$0xff]
        %v805 = vld [vmem:[%s793 + $0x58] sm:$0xff]
        %v806 = vld [vmem:[%s793 + $0x60] sm:$0xff]
        %v807 = vld [vmem:[%s793 + $0x68] sm:$0xff]
        %v808 = vld [vmem:[%s793 + $0x70] sm:$0xff]
        %v809 = vld [vmem:[%s793 + $0x78] sm:$0xff]
        %v810 = vld [vmem:[%s793 + $0x80] sm:$0xff]
        %v811 = vld [vmem:[%s793 + $0x88] sm:$0xff]
        %v812 = vld [vmem:[%s793 + $0x90] sm:$0xff]
        %v813 = vld [vmem:[%s793 + $0x98] sm:$0xff]
        %v814 = vld [vmem:[%s793 + $0xa0] sm:$0xff]
        %v815 = vld [vmem:[%s793 + $0xa8] sm:$0xff]
        %v816 = vld [vmem:[%s793 + $0xb0] sm:$0xff]
        %v817 = vld [vmem:[%s793 + $0xb8] sm:$0xff]
        %v818 = vld [vmem:[%s793 + $0xc0] sm:$0xff]
        %v819 = vld [vmem:[%s793 + $0xc8] sm:$0xff]
        %v820 = vld [vmem:[%s793 + $0xd0] sm:$0xff]
        %v821 = vld [vmem:[%s793 + $0xd8] sm:$0xff]
        %v822 = vld [vmem:[%s793 + $0xe0] sm:$0xff]
        %v823 = vld [vmem:[%s793 + $0xe8] sm:$0xff]
        %v824 = vld [vmem:[%s793 + $0xf0] sm:$0xff]
        %v825 = vld [vmem:[%s793 + $0xf8] sm:$0xff]
        %v826 = vperm.slane %v713, 1
        %v827 = vperm.slane %v713, 5
        %830 = vmatpush.msra.mxu0 %v809
        %831 = vmatpush.msra.mxu0 %v808
        %832 = vmatpush.msra.mxu0 %v807
        %833 = vmatpush.msra.mxu0 %v806
        %834 = vmatpush.msra.mxu0 %v805
        %835 = vmatpush.msra.mxu0 %v804
        %836 = vmatpush.msra.mxu0 %v803
        %837 = vmatpush.msra.mxu0 %v802
        %838 = vmatpush.msra.mxu0 %v801
        %839 = vmatpush.msra.mxu0 %v800
        %840 = vmatpush.msra.mxu0 %v799
        %841 = vmatpush.msra.mxu0 %v798
        %842 = vmatpush.msra.mxu0 %v797
        %843 = vmatpush.msra.mxu0 %v796
        %844 = vmatpush.msra.mxu0 %v795
        %845 = vmatpush.msra.mxu0 %v794
        %846 = vmatmul.f32.gmra.mxu0 %v826
        %v847 = vpop.f32.mrf.mxu0
        %v848 = vadd.f32 0.0, %v847
        %849 = vdwg.mxu0
        %850 = vmatpush.msra.mxu0 %v825
        %851 = vmatpush.msra.mxu0 %v824
        %852 = vmatpush.msra.mxu0 %v823
        %853 = vmatpush.msra.mxu0 %v822
        %854 = vmatpush.msra.mxu0 %v821
        %855 = vmatpush.msra.mxu0 %v820
        %856 = vmatpush.msra.mxu0 %v819
        %857 = vmatpush.msra.mxu0 %v818
        %858 = vmatpush.msra.mxu0 %v817
        %859 = vmatpush.msra.mxu0 %v816
        %860 = vmatpush.msra.mxu0 %v815
        %861 = vmatpush.msra.mxu0 %v814
        %862 = vmatpush.msra.mxu0 %v813
        %863 = vmatpush.msra.mxu0 %v812
        %864 = vmatpush.msra.mxu0 %v811
        %865 = vmatpush.msra.mxu0 %v810
        %866 = vmatmul.f32.gmra.mxu0 %v827
        %v867 = vpop.f32.mrf.mxu0
        %v868 = vadd.f32 %v848, %v867
        %869 = vdwg.mxu0
        %v870 = vadd.f32 %v792, %v868
        %s871 = scalar_lea.vmem %s3, 1792
        %v872 = vld [vmem:[%s871] sm:$0xff]
        %v873 = vld [vmem:[%s871 + $0x8] sm:$0xff]
        %v874 = vld [vmem:[%s871 + $0x10] sm:$0xff]
        %v875 = vld [vmem:[%s871 + $0x18] sm:$0xff]
        %v876 = vld [vmem:[%s871 + $0x20] sm:$0xff]
        %v877 = vld [vmem:[%s871 + $0x28] sm:$0xff]
        %v878 = vld [vmem:[%s871 + $0x30] sm:$0xff]
        %v879 = vld [vmem:[%s871 + $0x38] sm:$0xff]
        %v880 = vld [vmem:[%s871 + $0x40] sm:$0xff]
        %v881 = vld [vmem:[%s871 + $0x48] sm:$0xff]
        %v882 = vld [vmem:[%s871 + $0x50] sm:$0xff]
        %v883 = vld [vmem:[%s871 + $0x58] sm:$0xff]
        %v884 = vld [vmem:[%s871 + $0x60] sm:$0xff]
        %v885 = vld [vmem:[%s871 + $0x68] sm:$0xff]
        %v886 = vld [vmem:[%s871 + $0x70] sm:$0xff]
        %v887 = vld [vmem:[%s871 + $0x78] sm:$0xff]
        %v888 = vld [vmem:[%s871 + $0x80] sm:$0xff]
        %v889 = vld [vmem:[%s871 + $0x88] sm:$0xff]
        %v890 = vld [vmem:[%s871 + $0x90] sm:$0xff]
        %v891 = vld [vmem:[%s871 + $0x98] sm:$0xff]
        %v892 = vld [vmem:[%s871 + $0xa0] sm:$0xff]
        %v893 = vld [vmem:[%s871 + $0xa8] sm:$0xff]
        %v894 = vld [vmem:[%s871 + $0xb0] sm:$0xff]
        %v895 = vld [vmem:[%s871 + $0xb8] sm:$0xff]
        %v896 = vld [vmem:[%s871 + $0xc0] sm:$0xff]
        %v897 = vld [vmem:[%s871 + $0xc8] sm:$0xff]
        %v898 = vld [vmem:[%s871 + $0xd0] sm:$0xff]
        %v899 = vld [vmem:[%s871 + $0xd8] sm:$0xff]
        %v900 = vld [vmem:[%s871 + $0xe0] sm:$0xff]
        %v901 = vld [vmem:[%s871 + $0xe8] sm:$0xff]
        %v902 = vld [vmem:[%s871 + $0xf0] sm:$0xff]
        %v903 = vld [vmem:[%s871 + $0xf8] sm:$0xff]
        %v904 = vperm.slane %v713, 2
        %v905 = vperm.slane %v713, 6
        %908 = vmatpush.msra.mxu0 %v887
        %909 = vmatpush.msra.mxu0 %v886
        %910 = vmatpush.msra.mxu0 %v885
        %911 = vmatpush.msra.mxu0 %v884
        %912 = vmatpush.msra.mxu0 %v883
        %913 = vmatpush.msra.mxu0 %v882
        %914 = vmatpush.msra.mxu0 %v881
        %915 = vmatpush.msra.mxu0 %v880
        %916 = vmatpush.msra.mxu0 %v879
        %917 = vmatpush.msra.mxu0 %v878
        %918 = vmatpush.msra.mxu0 %v877
        %919 = vmatpush.msra.mxu0 %v876
        %920 = vmatpush.msra.mxu0 %v875
        %921 = vmatpush.msra.mxu0 %v874
        %922 = vmatpush.msra.mxu0 %v873
        %923 = vmatpush.msra.mxu0 %v872
        %924 = vmatmul.f32.gmra.mxu0 %v904
        %v925 = vpop.f32.mrf.mxu0
        %v926 = vadd.f32 0.0, %v925
        %927 = vdwg.mxu0
        %928 = vmatpush.msra.mxu0 %v903
        %929 = vmatpush.msra.mxu0 %v902
        %930 = vmatpush.msra.mxu0 %v901
        %931 = vmatpush.msra.mxu0 %v900
        %932 = vmatpush.msra.mxu0 %v899
        %933 = vmatpush.msra.mxu0 %v898
        %934 = vmatpush.msra.mxu0 %v897
        %935 = vmatpush.msra.mxu0 %v896
        %936 = vmatpush.msra.mxu0 %v895
        %937 = vmatpush.msra.mxu0 %v894
        %938 = vmatpush.msra.mxu0 %v893
        %939 = vmatpush.msra.mxu0 %v892
        %940 = vmatpush.msra.mxu0 %v891
        %941 = vmatpush.msra.mxu0 %v890
        %942 = vmatpush.msra.mxu0 %v889
        %943 = vmatpush.msra.mxu0 %v888
        %944 = vmatmul.f32.gmra.mxu0 %v905
        %v945 = vpop.f32.mrf.mxu0
        %v946 = vadd.f32 %v926, %v945
        %947 = vdwg.mxu0
        %v948 = vadd.f32 %v870, %v946
        %s949 = scalar_lea.vmem %s3, 2560
        %v950 = vld [vmem:[%s949] sm:$0xff]
        %v951 = vld [vmem:[%s949 + $0x8] sm:$0xff]
        %v952 = vld [vmem:[%s949 + $0x10] sm:$0xff]
        %v953 = vld [vmem:[%s949 + $0x18] sm:$0xff]
        %v954 = vld [vmem:[%s949 + $0x20] sm:$0xff]
        %v955 = vld [vmem:[%s949 + $0x28] sm:$0xff]
        %v956 = vld [vmem:[%s949 + $0x30] sm:$0xff]
        %v957 = vld [vmem:[%s949 + $0x38] sm:$0xff]
        %v958 = vld [vmem:[%s949 + $0x40] sm:$0xff]
        %v959 = vld [vmem:[%s949 + $0x48] sm:$0xff]
        %v960 = vld [vmem:[%s949 + $0x50] sm:$0xff]
        %v961 = vld [vmem:[%s949 + $0x58] sm:$0xff]
        %v962 = vld [vmem:[%s949 + $0x60] sm:$0xff]
        %v963 = vld [vmem:[%s949 + $0x68] sm:$0xff]
        %v964 = vld [vmem:[%s949 + $0x70] sm:$0xff]
        %v965 = vld [vmem:[%s949 + $0x78] sm:$0xff]
        %v966 = vld [vmem:[%s949 + $0x80] sm:$0xff]
        %v967 = vld [vmem:[%s949 + $0x88] sm:$0xff]
        %v968 = vld [vmem:[%s949 + $0x90] sm:$0xff]
        %v969 = vld [vmem:[%s949 + $0x98] sm:$0xff]
        %v970 = vld [vmem:[%s949 + $0xa0] sm:$0xff]
        %v971 = vld [vmem:[%s949 + $0xa8] sm:$0xff]
        %v972 = vld [vmem:[%s949 + $0xb0] sm:$0xff]
        %v973 = vld [vmem:[%s949 + $0xb8] sm:$0xff]
        %v974 = vld [vmem:[%s949 + $0xc0] sm:$0xff]
        %v975 = vld [vmem:[%s949 + $0xc8] sm:$0xff]
        %v976 = vld [vmem:[%s949 + $0xd0] sm:$0xff]
        %v977 = vld [vmem:[%s949 + $0xd8] sm:$0xff]
        %v978 = vld [vmem:[%s949 + $0xe0] sm:$0xff]
        %v979 = vld [vmem:[%s949 + $0xe8] sm:$0xff]
        %v980 = vld [vmem:[%s949 + $0xf0] sm:$0xff]
        %v981 = vld [vmem:[%s949 + $0xf8] sm:$0xff]
        %v982 = vperm.slane %v713, 3
        %v983 = vperm.slane %v713, 7
        %986 = vmatpush.msra.mxu0 %v965
        %987 = vmatpush.msra.mxu0 %v964
        %988 = vmatpush.msra.mxu0 %v963
        %989 = vmatpush.msra.mxu0 %v962
        %990 = vmatpush.msra.mxu0 %v961
        %991 = vmatpush.msra.mxu0 %v960
        %992 = vmatpush.msra.mxu0 %v959
        %993 = vmatpush.msra.mxu0 %v958
        %994 = vmatpush.msra.mxu0 %v957
        %995 = vmatpush.msra.mxu0 %v956
        %996 = vmatpush.msra.mxu0 %v955
        %997 = vmatpush.msra.mxu0 %v954
        %998 = vmatpush.msra.mxu0 %v953
        %999 = vmatpush.msra.mxu0 %v952
        %1000 = vmatpush.msra.mxu0 %v951
        %1001 = vmatpush.msra.mxu0 %v950
        %1002 = vmatmul.f32.gmra.mxu0 %v982
        %v1003 = vpop.f32.mrf.mxu0
        %v1004 = vadd.f32 0.0, %v1003
        %1005 = vdwg.mxu0
        %1006 = vmatpush.msra.mxu0 %v981
        %1007 = vmatpush.msra.mxu0 %v980
        %1008 = vmatpush.msra.mxu0 %v979
        %1009 = vmatpush.msra.mxu0 %v978
        %1010 = vmatpush.msra.mxu0 %v977
        %1011 = vmatpush.msra.mxu0 %v976
        %1012 = vmatpush.msra.mxu0 %v975
        %1013 = vmatpush.msra.mxu0 %v974
        %1014 = vmatpush.msra.mxu0 %v973
        %1015 = vmatpush.msra.mxu0 %v972
        %1016 = vmatpush.msra.mxu0 %v971
        %1017 = vmatpush.msra.mxu0 %v970
        %1018 = vmatpush.msra.mxu0 %v969
        %1019 = vmatpush.msra.mxu0 %v968
        %1020 = vmatpush.msra.mxu0 %v967
        %1021 = vmatpush.msra.mxu0 %v966
        %1022 = vmatmul.f32.gmra.mxu0 %v983
        %v1023 = vpop.f32.mrf.mxu0
        %v1024 = vadd.f32 %v1004, %v1023
        %1025 = vdwg.mxu0
        %v1026 = vadd.f32 %v948, %v1024
        %s1027 = sld [smem:[#allocation2 + $0x2]]
        %v1028 = vstv %s1027
        %v1029 = vmul.f32 %v249, %v1028
        %s1030 = sld [smem:[#allocation2 + $0x82]]
        %v1031 = vstv %s1030
        %v1032 = vmul.f32 %v249, %v1031
        %v1033 = vmul.f32 %v250, %v1031
        %1036 = vrot.lane.b32.xlu0 %v1032, 127
        %v1037 = vpop.permute.xlu0 %1036
        %1038 = vrot.lane.b32.xlu0 %v1033, 127
        %v1039 = vpop.permute.xlu0 %1038
        %v1040 = vrot.slane %v1037, 4
        %v1041 = vrot.slane %v1039, 4
        %v1042 = vsel %vm267, %v1040, %v1041
        %v1043 = vsel %vm269, %v1037, %v1042
        %v1045 = vadd.f32 %v1029, %v1043
        %s1046 = sld [smem:[#allocation2 + $0x102]]
        %v1047 = vstv %s1046
        %v1048 = vmul.f32 %v249, %v1047
        %v1049 = vmul.f32 %v250, %v1047
        %1052 = vrot.lane.b32.xlu0 %v1048, 112
        %v1053 = vpop.permute.xlu0 %1052
        %1054 = vrot.lane.b32.xlu0 %v1049, 112
        %v1055 = vpop.permute.xlu0 %1054
        %v1056 = vrot.slane %v1053, 4
        %v1057 = vrot.slane %v1055, 4
        %v1058 = vsel %vm267, %v1056, %v1057
        %v1059 = vsel %vm286, %v1053, %v1058
        %v1061 = vadd.f32 %v1045, %v1059
        %s1062 = sld [smem:[#allocation2 + $0x182]]
        %v1063 = vstv %s1062
        %v1064 = vmul.f32 %v249, %v1063
        %v1065 = vmul.f32 %v250, %v1063
        %1068 = vrot.lane.b32.xlu0 %v1064, 111
        %v1069 = vpop.permute.xlu0 %1068
        %1070 = vrot.lane.b32.xlu0 %v1065, 111
        %v1071 = vpop.permute.xlu0 %1070
        %v1072 = vrot.slane %v1069, 4
        %v1073 = vrot.slane %v1071, 4
        %v1074 = vsel %vm267, %v1072, %v1073
        %v1075 = vsel %vm303, %v1069, %v1074
        %v1077 = vadd.f32 %v1061, %v1075
        %s1078 = sld [smem:[#allocation5 + $0x2]]
        %v1079 = vstv %s1078
        %v1080 = vadd.f32 %v1077, %v1079
        %v1081 = vxor.u32 %v1080, 2147483648
        %v1082 = vmul.f32 %v1081, 1.442695
        %v1083 = vpow.pop %v1082
        %v1084 = vadd.f32 %v1083, 1.0
        %v1085 = vrcp.pop %v1084
        %v1086 = vmul.f32 %v1084, %v1085
        %v1087 = vsub.f32 1.0, %v1086
        %v1088 = vmul.f32 %v1085, %v1087
        %v1089 = vadd.f32 %v1085, %v1088
        %vm1090 = vweird.f32 %v1084
        %vm1091 = vweird.f32 %v1085
        %vm1092 = vmor %vm1090, %vm1091
        %v1093 = vsel %vm1092, %v1085, %v1089
        %v1094 = vand.u32 2147483647, %v1084
        %vm1095 = vcmp.eq.f32.partialorder %v1094, 8.507059e+37
        %v1096 = vand.u32 %v1084, 2147483648
        %v1097 = vor.u32 1.1754944e-38, %v1096
        %v1098 = vsel %vm1095, %v1097, %v1093
        %v1099 = vmul.f32 1.0, %v1098
        %s1100 = scalar_lea.vmem %s3, 512
        %v1101 = vld [vmem:[%s1100] sm:$0xff]
        %v1102 = vld [vmem:[%s1100 + $0x8] sm:$0xff]
        %v1103 = vld [vmem:[%s1100 + $0x10] sm:$0xff]
        %v1104 = vld [vmem:[%s1100 + $0x18] sm:$0xff]
        %v1105 = vld [vmem:[%s1100 + $0x20] sm:$0xff]
        %v1106 = vld [vmem:[%s1100 + $0x28] sm:$0xff]
        %v1107 = vld [vmem:[%s1100 + $0x30] sm:$0xff]
        %v1108 = vld [vmem:[%s1100 + $0x38] sm:$0xff]
        %v1109 = vld [vmem:[%s1100 + $0x40] sm:$0xff]
        %v1110 = vld [vmem:[%s1100 + $0x48] sm:$0xff]
        %v1111 = vld [vmem:[%s1100 + $0x50] sm:$0xff]
        %v1112 = vld [vmem:[%s1100 + $0x58] sm:$0xff]
        %v1113 = vld [vmem:[%s1100 + $0x60] sm:$0xff]
        %v1114 = vld [vmem:[%s1100 + $0x68] sm:$0xff]
        %v1115 = vld [vmem:[%s1100 + $0x70] sm:$0xff]
        %v1116 = vld [vmem:[%s1100 + $0x78] sm:$0xff]
        %v1117 = vld [vmem:[%s1100 + $0x80] sm:$0xff]
        %v1118 = vld [vmem:[%s1100 + $0x88] sm:$0xff]
        %v1119 = vld [vmem:[%s1100 + $0x90] sm:$0xff]
        %v1120 = vld [vmem:[%s1100 + $0x98] sm:$0xff]
        %v1121 = vld [vmem:[%s1100 + $0xa0] sm:$0xff]
        %v1122 = vld [vmem:[%s1100 + $0xa8] sm:$0xff]
        %v1123 = vld [vmem:[%s1100 + $0xb0] sm:$0xff]
        %v1124 = vld [vmem:[%s1100 + $0xb8] sm:$0xff]
        %v1125 = vld [vmem:[%s1100 + $0xc0] sm:$0xff]
        %v1126 = vld [vmem:[%s1100 + $0xc8] sm:$0xff]
        %v1127 = vld [vmem:[%s1100 + $0xd0] sm:$0xff]
        %v1128 = vld [vmem:[%s1100 + $0xd8] sm:$0xff]
        %v1129 = vld [vmem:[%s1100 + $0xe0] sm:$0xff]
        %v1130 = vld [vmem:[%s1100 + $0xe8] sm:$0xff]
        %v1131 = vld [vmem:[%s1100 + $0xf0] sm:$0xff]
        %v1132 = vld [vmem:[%s1100 + $0xf8] sm:$0xff]
        %v1134 = vperm.slane %v1099, 0
        %v1135 = vperm.slane %v1099, 4
        %1138 = vmatpush.msra.mxu0 %v1116
        %1139 = vmatpush.msra.mxu0 %v1115
        %1140 = vmatpush.msra.mxu0 %v1114
        %1141 = vmatpush.msra.mxu0 %v1113
        %1142 = vmatpush.msra.mxu0 %v1112
        %1143 = vmatpush.msra.mxu0 %v1111
        %1144 = vmatpush.msra.mxu0 %v1110
        %1145 = vmatpush.msra.mxu0 %v1109
        %1146 = vmatpush.msra.mxu0 %v1108
        %1147 = vmatpush.msra.mxu0 %v1107
        %1148 = vmatpush.msra.mxu0 %v1106
        %1149 = vmatpush.msra.mxu0 %v1105
        %1150 = vmatpush.msra.mxu0 %v1104
        %1151 = vmatpush.msra.mxu0 %v1103
        %1152 = vmatpush.msra.mxu0 %v1102
        %1153 = vmatpush.msra.mxu0 %v1101
        %1154 = vmatmul.f32.gmra.mxu0 %v1134
        %v1155 = vpop.f32.mrf.mxu0
        %v1156 = vadd.f32 0.0, %v1155
        %1157 = vdwg.mxu0
        %1158 = vmatpush.msra.mxu0 %v1132
        %1159 = vmatpush.msra.mxu0 %v1131
        %1160 = vmatpush.msra.mxu0 %v1130
        %1161 = vmatpush.msra.mxu0 %v1129
        %1162 = vmatpush.msra.mxu0 %v1128
        %1163 = vmatpush.msra.mxu0 %v1127
        %1164 = vmatpush.msra.mxu0 %v1126
        %1165 = vmatpush.msra.mxu0 %v1125
        %1166 = vmatpush.msra.mxu0 %v1124
        %1167 = vmatpush.msra.mxu0 %v1123
        %1168 = vmatpush.msra.mxu0 %v1122
        %1169 = vmatpush.msra.mxu0 %v1121
        %1170 = vmatpush.msra.mxu0 %v1120
        %1171 = vmatpush.msra.mxu0 %v1119
        %1172 = vmatpush.msra.mxu0 %v1118
        %1173 = vmatpush.msra.mxu0 %v1117
        %1174 = vmatmul.f32.gmra.mxu0 %v1135
        %v1175 = vpop.f32.mrf.mxu0
        %v1176 = vadd.f32 %v1156, %v1175
        %1177 = vdwg.mxu0
        %v1178 = vadd.f32 %v1026, %v1176
        %s1179 = scalar_lea.vmem %s3, 1280
        %v1180 = vld [vmem:[%s1179] sm:$0xff]
        %v1181 = vld [vmem:[%s1179 + $0x8] sm:$0xff]
        %v1182 = vld [vmem:[%s1179 + $0x10] sm:$0xff]
        %v1183 = vld [vmem:[%s1179 + $0x18] sm:$0xff]
        %v1184 = vld [vmem:[%s1179 + $0x20] sm:$0xff]
        %v1185 = vld [vmem:[%s1179 + $0x28] sm:$0xff]
        %v1186 = vld [vmem:[%s1179 + $0x30] sm:$0xff]
        %v1187 = vld [vmem:[%s1179 + $0x38] sm:$0xff]
        %v1188 = vld [vmem:[%s1179 + $0x40] sm:$0xff]
        %v1189 = vld [vmem:[%s1179 + $0x48] sm:$0xff]
        %v1190 = vld [vmem:[%s1179 + $0x50] sm:$0xff]
        %v1191 = vld [vmem:[%s1179 + $0x58] sm:$0xff]
        %v1192 = vld [vmem:[%s1179 + $0x60] sm:$0xff]
        %v1193 = vld [vmem:[%s1179 + $0x68] sm:$0xff]
        %v1194 = vld [vmem:[%s1179 + $0x70] sm:$0xff]
        %v1195 = vld [vmem:[%s1179 + $0x78] sm:$0xff]
        %v1196 = vld [vmem:[%s1179 + $0x80] sm:$0xff]
        %v1197 = vld [vmem:[%s1179 + $0x88] sm:$0xff]
        %v1198 = vld [vmem:[%s1179 + $0x90] sm:$0xff]
        %v1199 = vld [vmem:[%s1179 + $0x98] sm:$0xff]
        %v1200 = vld [vmem:[%s1179 + $0xa0] sm:$0xff]
        %v1201 = vld [vmem:[%s1179 + $0xa8] sm:$0xff]
        %v1202 = vld [vmem:[%s1179 + $0xb0] sm:$0xff]
        %v1203 = vld [vmem:[%s1179 + $0xb8] sm:$0xff]
        %v1204 = vld [vmem:[%s1179 + $0xc0] sm:$0xff]
        %v1205 = vld [vmem:[%s1179 + $0xc8] sm:$0xff]
        %v1206 = vld [vmem:[%s1179 + $0xd0] sm:$0xff]
        %v1207 = vld [vmem:[%s1179 + $0xd8] sm:$0xff]
        %v1208 = vld [vmem:[%s1179 + $0xe0] sm:$0xff]
        %v1209 = vld [vmem:[%s1179 + $0xe8] sm:$0xff]
        %v1210 = vld [vmem:[%s1179 + $0xf0] sm:$0xff]
        %v1211 = vld [vmem:[%s1179 + $0xf8] sm:$0xff]
        %v1212 = vperm.slane %v1099, 1
        %v1213 = vperm.slane %v1099, 5
        %1216 = vmatpush.msra.mxu0 %v1195
        %1217 = vmatpush.msra.mxu0 %v1194
        %1218 = vmatpush.msra.mxu0 %v1193
        %1219 = vmatpush.msra.mxu0 %v1192
        %1220 = vmatpush.msra.mxu0 %v1191
        %1221 = vmatpush.msra.mxu0 %v1190
        %1222 = vmatpush.msra.mxu0 %v1189
        %1223 = vmatpush.msra.mxu0 %v1188
        %1224 = vmatpush.msra.mxu0 %v1187
        %1225 = vmatpush.msra.mxu0 %v1186
        %1226 = vmatpush.msra.mxu0 %v1185
        %1227 = vmatpush.msra.mxu0 %v1184
        %1228 = vmatpush.msra.mxu0 %v1183
        %1229 = vmatpush.msra.mxu0 %v1182
        %1230 = vmatpush.msra.mxu0 %v1181
        %1231 = vmatpush.msra.mxu0 %v1180
        %1232 = vmatmul.f32.gmra.mxu0 %v1212
        %v1233 = vpop.f32.mrf.mxu0
        %v1234 = vadd.f32 0.0, %v1233
        %1235 = vdwg.mxu0
        %1236 = vmatpush.msra.mxu0 %v1211
        %1237 = vmatpush.msra.mxu0 %v1210
        %1238 = vmatpush.msra.mxu0 %v1209
        %1239 = vmatpush.msra.mxu0 %v1208
        %1240 = vmatpush.msra.mxu0 %v1207
        %1241 = vmatpush.msra.mxu0 %v1206
        %1242 = vmatpush.msra.mxu0 %v1205
        %1243 = vmatpush.msra.mxu0 %v1204
        %1244 = vmatpush.msra.mxu0 %v1203
        %1245 = vmatpush.msra.mxu0 %v1202
        %1246 = vmatpush.msra.mxu0 %v1201
        %1247 = vmatpush.msra.mxu0 %v1200
        %1248 = vmatpush.msra.mxu0 %v1199
        %1249 = vmatpush.msra.mxu0 %v1198
        %1250 = vmatpush.msra.mxu0 %v1197
        %1251 = vmatpush.msra.mxu0 %v1196
        %1252 = vmatmul.f32.gmra.mxu0 %v1213
        %v1253 = vpop.f32.mrf.mxu0
        %v1254 = vadd.f32 %v1234, %v1253
        %1255 = vdwg.mxu0
        %v1256 = vadd.f32 %v1178, %v1254
        %s1257 = scalar_lea.vmem %s3, 2048
        %v1258 = vld [vmem:[%s1257] sm:$0xff]
        %v1259 = vld [vmem:[%s1257 + $0x8] sm:$0xff]
        %v1260 = vld [vmem:[%s1257 + $0x10] sm:$0xff]
        %v1261 = vld [vmem:[%s1257 + $0x18] sm:$0xff]
        %v1262 = vld [vmem:[%s1257 + $0x20] sm:$0xff]
        %v1263 = vld [vmem:[%s1257 + $0x28] sm:$0xff]
        %v1264 = vld [vmem:[%s1257 + $0x30] sm:$0xff]
        %v1265 = vld [vmem:[%s1257 + $0x38] sm:$0xff]
        %v1266 = vld [vmem:[%s1257 + $0x40] sm:$0xff]
        %v1267 = vld [vmem:[%s1257 + $0x48] sm:$0xff]
        %v1268 = vld [vmem:[%s1257 + $0x50] sm:$0xff]
        %v1269 = vld [vmem:[%s1257 + $0x58] sm:$0xff]
        %v1270 = vld [vmem:[%s1257 + $0x60] sm:$0xff]
        %v1271 = vld [vmem:[%s1257 + $0x68] sm:$0xff]
        %v1272 = vld [vmem:[%s1257 + $0x70] sm:$0xff]
        %v1273 = vld [vmem:[%s1257 + $0x78] sm:$0xff]
        %v1274 = vld [vmem:[%s1257 + $0x80] sm:$0xff]
        %v1275 = vld [vmem:[%s1257 + $0x88] sm:$0xff]
        %v1276 = vld [vmem:[%s1257 + $0x90] sm:$0xff]
        %v1277 = vld [vmem:[%s1257 + $0x98] sm:$0xff]
        %v1278 = vld [vmem:[%s1257 + $0xa0] sm:$0xff]
        %v1279 = vld [vmem:[%s1257 + $0xa8] sm:$0xff]
        %v1280 = vld [vmem:[%s1257 + $0xb0] sm:$0xff]
        %v1281 = vld [vmem:[%s1257 + $0xb8] sm:$0xff]
        %v1282 = vld [vmem:[%s1257 + $0xc0] sm:$0xff]
        %v1283 = vld [vmem:[%s1257 + $0xc8] sm:$0xff]
        %v1284 = vld [vmem:[%s1257 + $0xd0] sm:$0xff]
        %v1285 = vld [vmem:[%s1257 + $0xd8] sm:$0xff]
        %v1286 = vld [vmem:[%s1257 + $0xe0] sm:$0xff]
        %v1287 = vld [vmem:[%s1257 + $0xe8] sm:$0xff]
        %v1288 = vld [vmem:[%s1257 + $0xf0] sm:$0xff]
        %v1289 = vld [vmem:[%s1257 + $0xf8] sm:$0xff]
        %v1290 = vperm.slane %v1099, 2
        %v1291 = vperm.slane %v1099, 6
        %1294 = vmatpush.msra.mxu0 %v1273
        %1295 = vmatpush.msra.mxu0 %v1272
        %1296 = vmatpush.msra.mxu0 %v1271
        %1297 = vmatpush.msra.mxu0 %v1270
        %1298 = vmatpush.msra.mxu0 %v1269
        %1299 = vmatpush.msra.mxu0 %v1268
        %1300 = vmatpush.msra.mxu0 %v1267
        %1301 = vmatpush.msra.mxu0 %v1266
        %1302 = vmatpush.msra.mxu0 %v1265
        %1303 = vmatpush.msra.mxu0 %v1264
        %1304 = vmatpush.msra.mxu0 %v1263
        %1305 = vmatpush.msra.mxu0 %v1262
        %1306 = vmatpush.msra.mxu0 %v1261
        %1307 = vmatpush.msra.mxu0 %v1260
        %1308 = vmatpush.msra.mxu0 %v1259
        %1309 = vmatpush.msra.mxu0 %v1258
        %1310 = vmatmul.f32.gmra.mxu0 %v1290
        %v1311 = vpop.f32.mrf.mxu0
        %v1312 = vadd.f32 0.0, %v1311
        %1313 = vdwg.mxu0
        %1314 = vmatpush.msra.mxu0 %v1289
        %1315 = vmatpush.msra.mxu0 %v1288
        %1316 = vmatpush.msra.mxu0 %v1287
        %1317 = vmatpush.msra.mxu0 %v1286
        %1318 = vmatpush.msra.mxu0 %v1285
        %1319 = vmatpush.msra.mxu0 %v1284
        %1320 = vmatpush.msra.mxu0 %v1283
        %1321 = vmatpush.msra.mxu0 %v1282
        %1322 = vmatpush.msra.mxu0 %v1281
        %1323 = vmatpush.msra.mxu0 %v1280
        %1324 = vmatpush.msra.mxu0 %v1279
        %1325 = vmatpush.msra.mxu0 %v1278
        %1326 = vmatpush.msra.mxu0 %v1277
        %1327 = vmatpush.msra.mxu0 %v1276
        %1328 = vmatpush.msra.mxu0 %v1275
        %1329 = vmatpush.msra.mxu0 %v1274
        %1330 = vmatmul.f32.gmra.mxu0 %v1291
        %v1331 = vpop.f32.mrf.mxu0
        %v1332 = vadd.f32 %v1312, %v1331
        %1333 = vdwg.mxu0
        %v1334 = vadd.f32 %v1256, %v1332
        %s1335 = scalar_lea.vmem %s3, 2816
        %v1336 = vld [vmem:[%s1335] sm:$0xff]
        %v1337 = vld [vmem:[%s1335 + $0x8] sm:$0xff]
        %v1338 = vld [vmem:[%s1335 + $0x10] sm:$0xff]
        %v1339 = vld [vmem:[%s1335 + $0x18] sm:$0xff]
        %v1340 = vld [vmem:[%s1335 + $0x20] sm:$0xff]
        %v1341 = vld [vmem:[%s1335 + $0x28] sm:$0xff]
        %v1342 = vld [vmem:[%s1335 + $0x30] sm:$0xff]
        %v1343 = vld [vmem:[%s1335 + $0x38] sm:$0xff]
        %v1344 = vld [vmem:[%s1335 + $0x40] sm:$0xff]
        %v1345 = vld [vmem:[%s1335 + $0x48] sm:$0xff]
        %v1346 = vld [vmem:[%s1335 + $0x50] sm:$0xff]
        %v1347 = vld [vmem:[%s1335 + $0x58] sm:$0xff]
        %v1348 = vld [vmem:[%s1335 + $0x60] sm:$0xff]
        %v1349 = vld [vmem:[%s1335 + $0x68] sm:$0xff]
        %v1350 = vld [vmem:[%s1335 + $0x70] sm:$0xff]
        %v1351 = vld [vmem:[%s1335 + $0x78] sm:$0xff]
        %v1352 = vld [vmem:[%s1335 + $0x80] sm:$0xff]
        %v1353 = vld [vmem:[%s1335 + $0x88] sm:$0xff]
        %v1354 = vld [vmem:[%s1335 + $0x90] sm:$0xff]
        %v1355 = vld [vmem:[%s1335 + $0x98] sm:$0xff]
        %v1356 = vld [vmem:[%s1335 + $0xa0] sm:$0xff]
        %v1357 = vld [vmem:[%s1335 + $0xa8] sm:$0xff]
        %v1358 = vld [vmem:[%s1335 + $0xb0] sm:$0xff]
        %v1359 = vld [vmem:[%s1335 + $0xb8] sm:$0xff]
        %v1360 = vld [vmem:[%s1335 + $0xc0] sm:$0xff]
        %v1361 = vld [vmem:[%s1335 + $0xc8] sm:$0xff]
        %v1362 = vld [vmem:[%s1335 + $0xd0] sm:$0xff]
        %v1363 = vld [vmem:[%s1335 + $0xd8] sm:$0xff]
        %v1364 = vld [vmem:[%s1335 + $0xe0] sm:$0xff]
        %v1365 = vld [vmem:[%s1335 + $0xe8] sm:$0xff]
        %v1366 = vld [vmem:[%s1335 + $0xf0] sm:$0xff]
        %v1367 = vld [vmem:[%s1335 + $0xf8] sm:$0xff]
        %v1368 = vperm.slane %v1099, 3
        %v1369 = vperm.slane %v1099, 7
        %1372 = vmatpush.msra.mxu0 %v1351
        %1373 = vmatpush.msra.mxu0 %v1350
        %1374 = vmatpush.msra.mxu0 %v1349
        %1375 = vmatpush.msra.mxu0 %v1348
        %1376 = vmatpush.msra.mxu0 %v1347
        %1377 = vmatpush.msra.mxu0 %v1346
        %1378 = vmatpush.msra.mxu0 %v1345
        %1379 = vmatpush.msra.mxu0 %v1344
        %1380 = vmatpush.msra.mxu0 %v1343
        %1381 = vmatpush.msra.mxu0 %v1342
        %1382 = vmatpush.msra.mxu0 %v1341
        %1383 = vmatpush.msra.mxu0 %v1340
        %1384 = vmatpush.msra.mxu0 %v1339
        %1385 = vmatpush.msra.mxu0 %v1338
        %1386 = vmatpush.msra.mxu0 %v1337
        %1387 = vmatpush.msra.mxu0 %v1336
        %1388 = vmatmul.f32.gmra.mxu0 %v1368
        %v1389 = vpop.f32.mrf.mxu0
        %v1390 = vadd.f32 0.0, %v1389
        %1391 = vdwg.mxu0
        %1392 = vmatpush.msra.mxu0 %v1367
        %1393 = vmatpush.msra.mxu0 %v1366
        %1394 = vmatpush.msra.mxu0 %v1365
        %1395 = vmatpush.msra.mxu0 %v1364
        %1396 = vmatpush.msra.mxu0 %v1363
        %1397 = vmatpush.msra.mxu0 %v1362
        %1398 = vmatpush.msra.mxu0 %v1361
        %1399 = vmatpush.msra.mxu0 %v1360
        %1400 = vmatpush.msra.mxu0 %v1359
        %1401 = vmatpush.msra.mxu0 %v1358
        %1402 = vmatpush.msra.mxu0 %v1357
        %1403 = vmatpush.msra.mxu0 %v1356
        %1404 = vmatpush.msra.mxu0 %v1355
        %1405 = vmatpush.msra.mxu0 %v1354
        %1406 = vmatpush.msra.mxu0 %v1353
        %1407 = vmatpush.msra.mxu0 %v1352
        %1408 = vmatmul.f32.gmra.mxu0 %v1369
        %v1409 = vpop.f32.mrf.mxu0
        %v1410 = vadd.f32 %v1390, %v1409
        %1411 = vdwg.mxu0
        %v1412 = vadd.f32 %v1334, %v1410
        %vm1413 = vcmask 73728
        %1414 = vst.msk [vmem:[%s243] sm:$0x1] %vm1413, %v1412
        %s1415 = sand.u32 %s139, 1
        %s1416 = scalar_lea.sflag [#allocation3], %s1415
        %s1417 = sand.u32 %s139, 1
        %s1418 = scalar_lea.vmem [#allocation7], %s1417
        // Predicated region
        $region49: #{tpu_custom_call.1} parent=39 // pred_check
          %p1419 = pneg %p149
        $region50: #{tpu_custom_call.1} parent=39 // pred_check_branch
          %1421 = sbr.rel (%p1419) target = $region52
        $region51: #{tpu_custom_call.1} parent=39 // pred_region
          %1423 = vsyncadd %s1416, 0
          %s1424 = scalar_lea.hbm %s5, %s21
          %s1426 = sshll.u32 %s1418, 4
          %s1427 = int_to_ptr.vmem [resolvable:$true] %s1426
          %s1428 = sshll.u32 %s1424, 4
          %s1429 = int_to_ptr.hbm [resolvable:$true] %s1428
          %1431 = dma.vmem_to_hbm [thread:$0]  %s1427, 16, %s1429, %s1416
        $region52: #{tpu_custom_call.1} parent=39 // pred_fallthru
          _
      $region40: #{tpu_custom_call.1} parent=5 // pred_fallthru
        _
      %p1432 = scmp.le.s32.totalorder 2, %s16
      // Predicated region
      $region53: #{tpu_custom_call.1} parent=5 // pred_check
        %p1433 = pneg %p1432
      $region54: #{tpu_custom_call.1} parent=5 // pred_check_branch
        %1435 = sbr.rel (%p1433) target = $region56
      $region55: #{tpu_custom_call.1} parent=5 // pred_region
        %s1436 = ssub.s32 %s16, 2
        // Predicated region
        $region57: #{tpu_custom_call.1} parent=55 // pred_check
          %p1437 = pneg %p155
        $region58: #{tpu_custom_call.1} parent=55 // pred_check_branch
          %1439 = sbr.rel (%p1437) target = $region60
        $region59: #{tpu_custom_call.1} parent=55 // pred_region
          %s1440 = sand.u32 %s140, 1
          %s1441 = scalar_lea.sflag [#allocation3], %s1440
          %s1442 = sand.u32 %s140, 1
          %s1443 = scalar_lea.vmem [#allocation7], %s1442
          %1445 = dma.done %s1441, 16
        $region60: #{tpu_custom_call.1} parent=55 // pred_fallthru
          _
      $region56: #{tpu_custom_call.1} parent=5 // pred_fallthru
        _
    $region6: #{tpu_custom_call.1} parent=1 // loop_footer
      %s20 = sadd.s32 1, %s16
    $region7: #{tpu_custom_call.1} parent=1 // loop_footer_branch
      %15 = sbr.rel target = $region3
    $region8: #{tpu_custom_call.1} parent=1 // loop_exit
      _
    %1446 = vsyncpa [#allocation3], 1
    %s1447 = scalar_lea.sflag [#allocation3], 1
    %1448 = vsyncpa %s1447, 1
    %1449 = vsyncpa [#allocation4], 1
    %s1450 = scalar_lea.sflag [#allocation4], 1
    %1451 = vsyncpa %s1450, 1
    %1452 = vsyncpa [#allocation6], 1

</llo_original>
